<compile_context>
chip_gen: v5e
topology: v5e:2x2
jax: 0.10.0
libtpu: 0.0.40
codegen_flags: <defaults>
</compile_context>

<pallas_src>
import functools
import math

import jax
import jax.numpy as jnp
import numpy as np
from jax.experimental import pallas as pl
from jax.experimental.pallas import tpu as pltpu


def _pe_kernel(*refs, c_xy, f_z, has_xy):
    """Writes one (C_out, TILE_N) output tile for one batch element.

    refs = ([xy_ref,] inv_dim_ref, phase_ref, inv_z_ref, depth_ref, o_ref)
      xy_ref      : (c_xy, TILE_N)  precomputed sin/cos x/y rows (batch-invariant)
      inv_dim_ref : (f_z, 1)        1 / dim_t column for the z group
      phase_ref   : (f_z, 1)        0 / pi/2 column (even->sin, odd->cos)
      inv_z_ref   : (1, 1)          scale / (max(depth_b) + eps)   (1.0 if !normalize)
      depth_ref   : (1, TILE_N)     depth values for this batch / N-tile
      o_ref       : (C_out, TILE_N) output tile
    """
    if has_xy:
        xy_ref, inv_dim_ref, phase_ref, inv_z_ref, depth_ref, o_ref = refs
        # Batch-invariant rows: pure VMEM->VMEM copy (vld/vst slots only).
        o_ref[0:c_xy, :] = xy_ref[...]
    else:
        inv_dim_ref, phase_ref, inv_z_ref, depth_ref, o_ref = refs

    # z (depth) rows: one sin per element via the phase trick.
    z = depth_ref[...] * inv_z_ref[...]                  # (1, TILE_N)
    arg = z * inv_dim_ref[...] + phase_ref[...]          # (f_z, TILE_N)
    o_ref[c_xy:c_xy + f_z, :] = jnp.sin(arg)


def positional_encoding_forward(x, depth, *, num_pos_feats_x=64, num_pos_feats_y=64,
                                num_pos_feats_z=64, temperature=10000,
                                normalize=True, scale=None):
    """x: (b, c, h, w) (only shape is used); depth: (b, 1, h, w). Returns (b, C_out, h, w) f32."""
    if scale is not None and normalize is False:
        raise ValueError("normalize should be True if scale is passed")
    if scale is None:
        scale = 2 * math.pi
    scale = float(scale)

    b, _, h, w = x.shape
    b_d, c_d, h_d, w_d = depth.shape
    assert b == b_d and c_d == 1 and h == h_d and w == w_d

    num_pos_feats = max(num_pos_feats_x, num_pos_feats_y, num_pos_feats_z)
    N = h * w
    eps = 1e-6
    has_xy = (num_pos_feats_x != 0 and num_pos_feats_y != 0)
    c_xy = (num_pos_feats_x + num_pos_feats_y) if has_xy else 0
    f_z = num_pos_feats_z
    C_out = c_xy + f_z

    # ---- static per-feature tables (host numpy, computed once at trace time) ----
    dim_t = np.arange(num_pos_feats, dtype=np.float64)
    dim_t = float(temperature) ** (2.0 * np.floor(dim_t / 2.0) / float(num_pos_feats))
    phase_col = np.where(np.arange(num_pos_feats) % 2 == 0, 0.0, np.pi / 2.0)  # cos = sin(.+pi/2)

    inv_dim_z = jnp.asarray((1.0 / dim_t[:f_z]).reshape(f_z, 1), dtype=jnp.float32)
    phase_z = jnp.asarray(phase_col[:f_z].reshape(f_z, 1), dtype=jnp.float32)

    # ---- batch-invariant x/y rows: built once, (c_xy, N) ----
    if has_xy:
        n = np.arange(N)
        x_embed = (n % w).astype(np.float64)   # column index j
        y_embed = (n // w).astype(np.float64)  # row index i
        if normalize:
            x_embed = x_embed / (float(w - 1) + eps) * scale   # global max of x grid = w-1
            y_embed = y_embed / (float(h - 1) + eps) * scale   # global max of y grid = h-1
        pos_x = np.sin(x_embed[None, :] / dim_t[:num_pos_feats_x, None]
                       + phase_col[:num_pos_feats_x, None])
        pos_y = np.sin(y_embed[None, :] / dim_t[:num_pos_feats_y, None]
                       + phase_col[:num_pos_feats_y, None])
        xy_table = jnp.asarray(np.concatenate([pos_x, pos_y], axis=0), dtype=jnp.float32)

    # ---- data-dependent inputs ----
    depth_flat = depth.reshape(b, 1, N).astype(jnp.float32)
    if normalize:
        z_max = jnp.max(depth_flat.reshape(b, -1), axis=1)                 # per-batch max (XLA)
        inv_z = (scale / (z_max + eps)).reshape(b, 1, 1).astype(jnp.float32)
    else:
        inv_z = jnp.ones((b, 1, 1), dtype=jnp.float32)

    # ---- N-axis tiling: lane-dense multiples of 128, capped at 512 ----
    tile_n = N
    for cand in (512, 256, 128):
        if N % cand == 0:
            tile_n = cand
            break
    n_tiles = N // tile_n

    kernel = functools.partial(_pe_kernel, c_xy=c_xy, f_z=f_z, has_xy=has_xy)

    in_specs = []
    inputs = []
    if has_xy:
        # Block index constant across the inner (batch) grid axis -> stays resident.
        in_specs.append(pl.BlockSpec((c_xy, tile_n), lambda it, ib: (0, it)))
        inputs.append(xy_table)
    in_specs += [
        pl.BlockSpec((f_z, 1), lambda it, ib: (0, 0)),          # inv_dim_t (resident)
        pl.BlockSpec((f_z, 1), lambda it, ib: (0, 0)),          # phase     (resident)
        pl.BlockSpec((None, 1, 1), lambda it, ib: (ib, 0, 0)),  # per-batch z scale
        pl.BlockSpec((None, 1, tile_n), lambda it, ib: (ib, 0, it)),  # depth tile
    ]
    inputs += [inv_dim_z, phase_z, inv_z, depth_flat]

    out = pl.pallas_call(
        kernel,
        out_shape=jax.ShapeDtypeStruct((b, C_out, N), jnp.float32),
        grid=(n_tiles, b),
        in_specs=in_specs,
        out_specs=pl.BlockSpec((None, C_out, tile_n), lambda it, ib: (ib, 0, it)),
        compiler_params=pltpu.CompilerParams(
            dimension_semantics=("parallel", "parallel")),
    )(*inputs)

    # (b, C_out, h*w) is already the channels-first layout; pure reshape, no transpose.
    return out.reshape(b, C_out, h, w)


def positional_encoding_ref(x, depth, *, num_pos_feats_x=64, num_pos_feats_y=64,
                            num_pos_feats_z=64, temperature=10000,
                            normalize=True, scale=None):
    """Pure-JAX reference mirroring the PyTorch forward exactly."""
    if scale is None:
        scale = 2 * math.pi
    b, _, h, w = x.shape
    num_pos_feats = max(num_pos_feats_x, num_pos_feats_y, num_pos_feats_z)

    y_embed = jnp.broadcast_to(jnp.arange(h, dtype=jnp.float32)[None, :, None], (b, h, w))
    x_embed = jnp.broadcast_to(jnp.arange(w, dtype=jnp.float32)[None, None, :], (b, h, w))
    z_embed = depth.reshape(b, h, w).astype(jnp.float32)

    if normalize:
        eps = 1e-6
        if num_pos_feats_x != 0 and num_pos_feats_y != 0:
            y_embed = y_embed / (jnp.max(y_embed) + eps) * scale
            x_embed = x_embed / (jnp.max(x_embed) + eps) * scale
        z_max = jnp.max(z_embed.reshape(b, -1), axis=1)
        z_embed = z_embed / (z_max[:, None, None] + eps) * scale

    dim_t = jnp.arange(num_pos_feats, dtype=jnp.float32)
    dim_t = temperature ** (2 * jnp.floor_divide(dim_t, 2.0) / num_pos_feats)

    def interleave(pos):   # (b, h, w, F) -> sin/cos interleaved along last dim
        s = jnp.sin(pos[..., 0::2])
        c = jnp.cos(pos[..., 1::2])
        return jnp.stack((s, c), axis=4).reshape(pos.shape[:3] + (-1,))

    pos_z = interleave(z_embed[..., None] / dim_t[:num_pos_feats_z])
    if num_pos_feats_x != 0 and num_pos_feats_y != 0:
        pos_x = interleave(x_embed[..., None] / dim_t[:num_pos_feats_x])
        pos_y = interleave(y_embed[..., None] / dim_t[:num_pos_feats_y])
        pos = jnp.concatenate((pos_x, pos_y, pos_z), axis=3)
    else:
        pos = pos_z
    return jnp.transpose(pos, (0, 3, 1, 2))


if __name__ == "__main__":
    # Small shapes consistent with the module: default 64/64/64 features -> C_out = 192.
    b, c, h, w = 2, 4, 16, 16
    key = jax.random.PRNGKey(0)
    k1, k2 = jax.random.split(key)
    x = jax.random.normal(k1, (b, c, h, w), dtype=jnp.float32)
    depth = jax.random.uniform(k2, (b, 1, h, w), dtype=jnp.float32, minval=0.1, maxval=5.0)

    out = positional_encoding_forward(x, depth)
    out = jax.block_until_ready(out)

    ref = positional_encoding_ref(x, depth)
    np.testing.assert_allclose(np.asarray(out), np.asarray(ref), rtol=2e-5, atol=2e-5)
    assert out.shape == (b, 192, h, w)
    print("KERNEL_OK")
</pallas_src>

<mosaic_0001>
module attributes {stable_mosaic.version = 11 : i64} {
  func.func @_pe_kernel(%arg0: i32, %arg1: i32, %arg2: memref<128x256xf32, #tpu.memory_space<vmem>>, %arg3: memref<64x1xf32, #tpu.memory_space<vmem>>, %arg4: memref<64x1xf32, #tpu.memory_space<vmem>>, %arg5: memref<1x1x1xf32, #tpu.memory_space<vmem>>, %arg6: memref<1x1x256xf32, #tpu.memory_space<vmem>>, %arg7: memref<1x192x256xf32, #tpu.memory_space<vmem>>) attributes {dimension_semantics = [#tpu.dimension_semantics<parallel>, #tpu.dimension_semantics<parallel>], iteration_bounds = array<i64: 1, 2>, scalar_prefetch = 0 : i64, scratch_operands = 0 : i64, tpu.core_type = #tpu.core_type<tc>, window_params = [{transform_indices = @transform_0, window_bounds = array<i64: 128, 256>}, {pipeline_mode = #tpu.pipeline_mode<synchronous>, transform_indices = @transform_1, window_bounds = array<i64: 64, 1>}, {pipeline_mode = #tpu.pipeline_mode<synchronous>, transform_indices = @transform_2, window_bounds = array<i64: 64, 1>}, {transform_indices = @transform_3, window_bounds = array<i64: 1, 1, 1>}, {transform_indices = @transform_4, window_bounds = array<i64: 1, 1, 256>}, {transform_indices = @transform_5, window_bounds = array<i64: 1, 192, 256>}]} {
    %c0 = arith.constant 0 : index
    %c0_0 = arith.constant 0 : index
    %0 = vector.load %arg2[%c0, %c0_0] : memref<128x256xf32, #tpu.memory_space<vmem>>, vector<128x256xf32>
    %c0_1 = arith.constant 0 : index
    %c0_2 = arith.constant 0 : index
    %c0_3 = arith.constant 0 : index
    %1 = vector.load %arg7[%c0_1, %c0_2, %c0_3] : memref<1x192x256xf32, #tpu.memory_space<vmem>>, vector<1x128x256xf32>
    %2 = vector.shape_cast %1 : vector<1x128x256xf32> to vector<128x256xf32>
    %3 = vector.shape_cast %0 : vector<128x256xf32> to vector<1x128x256xf32>
    tpu.vector_store %arg7[%c0_1, %c0_2, %c0_3], %3 {strides = array<i32>} : memref<1x192x256xf32, #tpu.memory_space<vmem>>, vector<1x128x256xf32>,
    %c0_4 = arith.constant 0 : index
    %c0_5 = arith.constant 0 : index
    %c0_6 = arith.constant 0 : index
    %4 = vector.load %arg6[%c0_4, %c0_5, %c0_6] : memref<1x1x256xf32, #tpu.memory_space<vmem>>, vector<1x1x256xf32>
    %5 = vector.shape_cast %4 : vector<1x1x256xf32> to vector<1x256xf32>
    %c0_7 = arith.constant 0 : index
    %c0_8 = arith.constant 0 : index
    %c0_9 = arith.constant 0 : index
    %6 = vector.load %arg5[%c0_7, %c0_8, %c0_9] : memref<1x1x1xf32, #tpu.memory_space<vmem>>, vector<1x1x1xf32>
    %7 = vector.shape_cast %6 : vector<1x1x1xf32> to vector<1x1xf32>
    %8 = vector.broadcast %7 : vector<1x1xf32> to vector<1x256xf32>
    %9 = arith.mulf %5, %8 : vector<1x256xf32>
    %c0_10 = arith.constant 0 : index
    %c0_11 = arith.constant 0 : index
    %10 = vector.load %arg3[%c0_10, %c0_11] : memref<64x1xf32, #tpu.memory_space<vmem>>, vector<64x1xf32>
    %11 = vector.broadcast %9 : vector<1x256xf32> to vector<64x256xf32>
    %12 = vector.broadcast %10 : vector<64x1xf32> to vector<64x256xf32>
    %13 = arith.mulf %11, %12 : vector<64x256xf32>
    %c0_12 = arith.constant 0 : index
    %c0_13 = arith.constant 0 : index
    %14 = vector.load %arg4[%c0_12, %c0_13] : memref<64x1xf32, #tpu.memory_space<vmem>>, vector<64x1xf32>
    %15 = vector.broadcast %14 : vector<64x1xf32> to vector<64x256xf32>
    %16 = arith.addf %13, %15 : vector<64x256xf32>
    %17 = math.sin %16 : vector<64x256xf32>
    %c0_14 = arith.constant 0 : index
    %c128 = arith.constant 128 : index
    %c0_15 = arith.constant 0 : index
    %18 = vector.load %arg7[%c0_14, %c128, %c0_15] : memref<1x192x256xf32, #tpu.memory_space<vmem>>, vector<1x64x256xf32>
    %19 = vector.shape_cast %18 : vector<1x64x256xf32> to vector<64x256xf32>
    %20 = vector.shape_cast %17 : vector<64x256xf32> to vector<1x64x256xf32>
    tpu.vector_store %arg7[%c0_14, %c128, %c0_15], %20 {strides = array<i32>} : memref<1x192x256xf32, #tpu.memory_space<vmem>>, vector<1x64x256xf32>,
    return
  }
  func.func @transform_0(%arg0: i32, %arg1: i32) -> (i32, i32) {
    %c0_i32 = arith.constant 0 : i32
    %c0_i32_0 = arith.constant 0 : i32
    return %c0_i32, %arg0 : i32, i32
  }
  func.func @transform_1(%arg0: i32, %arg1: i32) -> (i32, i32) {
    %c0_i32 = arith.constant 0 : i32
    %c0_i32_0 = arith.constant 0 : i32
    %c0_i32_1 = arith.constant 0 : i32
    return %c0_i32, %c0_i32_0 : i32, i32
  }
  func.func @transform_2(%arg0: i32, %arg1: i32) -> (i32, i32) {
    %c0_i32 = arith.constant 0 : i32
    %c0_i32_0 = arith.constant 0 : i32
    %c0_i32_1 = arith.constant 0 : i32
    return %c0_i32, %c0_i32_0 : i32, i32
  }
  func.func @transform_3(%arg0: i32, %arg1: i32) -> (i32, i32, i32) {
    %c0_i32 = arith.constant 0 : i32
    %c0_i32_0 = arith.constant 0 : i32
    %c0_i32_1 = arith.constant 0 : i32
    return %arg1, %c0_i32, %c0_i32_0 : i32, i32, i32
  }
  func.func @transform_4(%arg0: i32, %arg1: i32) -> (i32, i32, i32) {
    %c0_i32 = arith.constant 0 : i32
    %c0_i32_0 = arith.constant 0 : i32
    return %arg1, %c0_i32, %arg0 : i32, i32, i32
  }
  func.func @transform_5(%arg0: i32, %arg1: i32) -> (i32, i32, i32) {
    %c0_i32 = arith.constant 0 : i32
    %c0_i32_0 = arith.constant 0 : i32
    return %arg1, %c0_i32, %arg0 : i32, i32, i32
  }
}

</mosaic_0001>

<llo_original>
// kernel: tpu_custom_call.1
$region0: #{tpu_custom_call.1}
  #allocation0 [shape = 'u32[]', space=smem, size = 0x4, offset = 0x4, fixed_abs, tag = 'smem constant byte address 0x4 - core index']
  #allocation1 [shape = 'u32[72,128]{1,0:T(1,128)}', space=vmem, size = 0x9000, scoped, tag = 'internal scratch']
  %s0 = inlined_call_operand.hbm [shape: f32[128,256], index: 0, kind: input, shape index: {}]
  %s1 = inlined_call_operand.vmem [shape: f32[64,1], index: 1, kind: input, shape index: {}]
  %s2 = inlined_call_operand.vmem [shape: f32[64,1], index: 2, kind: input, shape index: {}]
  %s3 = inlined_call_operand.vmem [shape: f32[2,1,1], index: 3, kind: input, shape index: {}]
  %s4 = inlined_call_operand.vmem [shape: f32[2,1,256], index: 4, kind: input, shape index: {}]
  %s5 = inlined_call_operand.hbm [shape: f32[2,192,256], index: 5, kind: output, shape index: {}]
  %s6 = sld [smem:[#allocation0]]
  $region57: #{tpu_custom_call.1} parent=0
    _
  %s8 = ssub.s32 1, %s6
  %s9 = scalar_select 0, %s8, %s6
  $region1: #{tpu_custom_call.1} parent=0
    #allocation2 [shape = 'u8[131072]{0}', space=vmem, size = 0x20000, scoped, tag = 'input window, operand 0, single buffered']
    #allocation3 [shape = 's32[2]{0}', space=sflag, size = 0x8, scoped, tag = 'scoped memory for tpu_custom_call.1']
    #allocation4 [shape = 's32[2]{0}', space=sflag, size = 0x8, scoped, tag = 'scoped memory for tpu_custom_call.1']
    #allocation5 [shape = 'u8[393216]{0}', space=vmem, size = 0x60000, scoped, tag = 'output window, operand 0']
    %10 = vsyncpa [#allocation3], 0
    %11 = vsyncpa [#allocation4], 0
    %s12 = scalar_lea.sflag [#allocation4], 1
    %13 = vsyncpa %s12, 0
    loop: start=0, step=1, limit=4
    $region2: #{tpu_custom_call.1} parent=1 // loop_pre_header
      _
    $region3: #{tpu_custom_call.1} parent=1 // loop_header
      %s15 = sphi 0, %s19
      %p16 = scmp.ge.s32.totalorder %s15, 4
      %s22 = sphi 0, %s34
      %s23 = sphi 0, %s30
      %s24 = sphi 0, %s22
      %s25 = sphi 0, %s23
      %s26 = sphi 0, %s24
      %s27 = sphi 0, %s25
      %s37 = sphi 0, %s39
      %s40 = sphi 0, %s37
      %s41 = sphi 0, %s40
      %s57 = sphi 0, %s41
      %s61 = sphi 0, %s61
      %s63 = sphi 0, %s61
      %s64 = sphi 0, %s63
      %s78 = sphi 0, %s64
      %s82 = sphi 0, %s82
      %s84 = sphi 0, %s82
      %s85 = sphi 0, %s84
      %s99 = sphi 0, %s85
      %s105 = sphi 0, %s107
      %s108 = sphi 0, %s105
      %s109 = sphi 0, %s108
      %s125 = sphi 0, %s109
      %s133 = sphi 0, %s135
      %s136 = sphi 0, %s133
      %s137 = sphi 0, %s136
      %s153 = sphi 0, %s137
      %s161 = sphi 0, %s163
      %s164 = sphi 0, %s161
      %s165 = sphi 0, %s164
      %s181 = sphi 0, %s165
    $region4: #{tpu_custom_call.1} parent=1 // loop_header_branch
      %18 = sbr.rel (%p16) target = $region8
    $region5: #{tpu_custom_call.1} parent=1 // loop_body
      %s20 = ssub.s32 %s15, 1
      %s21 = ssub.s32 %s15, 2
      %s28 = sadd.s32 1, %s23
      %p29 = scmp.ge.s32.totalorder %s28, 2
      %s30 = scalar_select %p29, 0, %s28
      %s31 = sadd.s32 1, %s22
      %s32 = scalar_select %p29, %s31, %s22
      %p33 = scmp.ge.s32.totalorder %s32, 1
      %s34 = scalar_select %p33, 0, %s32
      %s35 = ssub.s32 %s22, %s34
      %p36 = scmp.eq.s32.totalorder %s35, 0
      %s38 = sadd.s32 %s37, 1
      %s39 = scalar_select %p36, %s37, %s38
      %p42 = pneg %p36
      %p43 = scmp.eq.s32.totalorder %s15, 1
      %p44 = por %p42, %p43
      %p45 = scmp.ne.s32.totalorder %s37, %s40
      %p46 = scmp.eq.s32.totalorder %s15, 0
      %p47 = por %p45, %p46
      %p48 = scmp.ne.s32.totalorder %s37, %s40
      %p49 = scmp.eq.s32.totalorder %s20, 1
      %p50 = por %p48, %p49
      %p51 = scmp.ne.s32.totalorder %s40, %s41
      %p52 = scmp.eq.s32.totalorder %s20, 0
      %p53 = por %p51, %p52
      %p54 = scmp.ne.s32.totalorder %s40, %s41
      %p55 = scmp.eq.s32.totalorder %s21, 1
      %p56 = por %p54, %p55
      %p58 = scmp.ne.s32.totalorder %s41, %s57
      %p59 = scmp.eq.s32.totalorder %s21, 0
      %p60 = por %p58, %p59
      %s62 = sadd.s32 %s61, 1
      %p65 = scmp.eq.s32.totalorder %s15, 1
      %p66 = scmp.ne.s32.totalorder %s61, %s63
      %p67 = scmp.eq.s32.totalorder %s15, 0
      %p68 = por %p66, %p67
      %p69 = scmp.ne.s32.totalorder %s61, %s63
      %p70 = scmp.eq.s32.totalorder %s20, 1
      %p71 = por %p69, %p70
      %p72 = scmp.ne.s32.totalorder %s63, %s64
      %p73 = scmp.eq.s32.totalorder %s20, 0
      %p74 = por %p72, %p73
      %p75 = scmp.ne.s32.totalorder %s63, %s64
      %p76 = scmp.eq.s32.totalorder %s21, 1
      %p77 = por %p75, %p76
      %p79 = scmp.ne.s32.totalorder %s64, %s78
      %p80 = scmp.eq.s32.totalorder %s21, 0
      %p81 = por %p79, %p80
      %s83 = sadd.s32 %s82, 1
      %p86 = scmp.eq.s32.totalorder %s15, 1
      %p87 = scmp.ne.s32.totalorder %s82, %s84
      %p88 = scmp.eq.s32.totalorder %s15, 0
      %p89 = por %p87, %p88
      %p90 = scmp.ne.s32.totalorder %s82, %s84
      %p91 = scmp.eq.s32.totalorder %s20, 1
      %p92 = por %p90, %p91
      %p93 = scmp.ne.s32.totalorder %s84, %s85
      %p94 = scmp.eq.s32.totalorder %s20, 0
      %p95 = por %p93, %p94
      %p96 = scmp.ne.s32.totalorder %s84, %s85
      %p97 = scmp.eq.s32.totalorder %s21, 1
      %p98 = por %p96, %p97
      %p100 = scmp.ne.s32.totalorder %s85, %s99
      %p101 = scmp.eq.s32.totalorder %s21, 0
      %p102 = por %p100, %p101
      %s103 = ssub.s32 %s23, %s30
      %p104 = scmp.eq.s32.totalorder %s103, 0
      %s106 = sadd.s32 %s105, 1
      %s107 = scalar_select %p104, %s105, %s106
      %p110 = pneg %p104
      %p111 = scmp.eq.s32.totalorder %s15, 1
      %p112 = por %p110, %p111
      %p113 = scmp.ne.s32.totalorder %s105, %s108
      %p114 = scmp.eq.s32.totalorder %s15, 0
      %p115 = por %p113, %p114
      %p116 = scmp.ne.s32.totalorder %s105, %s108
      %p117 = scmp.eq.s32.totalorder %s20, 1
      %p118 = por %p116, %p117
      %p119 = scmp.ne.s32.totalorder %s108, %s109
      %p120 = scmp.eq.s32.totalorder %s20, 0
      %p121 = por %p119, %p120
      %p122 = scmp.ne.s32.totalorder %s108, %s109
      %p123 = scmp.eq.s32.totalorder %s21, 1
      %p124 = por %p122, %p123
      %p126 = scmp.ne.s32.totalorder %s109, %s125
      %p127 = scmp.eq.s32.totalorder %s21, 0
      %p128 = por %p126, %p127
      %s129 = ssub.s32 %s23, %s30
      %s130 = ssub.s32 %s22, %s34
      %s131 = sor.u32 %s129, %s130
      %p132 = scmp.eq.s32.totalorder %s131, 0
      %s134 = sadd.s32 %s133, 1
      %s135 = scalar_select %p132, %s133, %s134
      %p138 = pneg %p132
      %p139 = scmp.eq.s32.totalorder %s15, 1
      %p140 = por %p138, %p139
      %p141 = scmp.ne.s32.totalorder %s133, %s136
      %p142 = scmp.eq.s32.totalorder %s15, 0
      %p143 = por %p141, %p142
      %p144 = scmp.ne.s32.totalorder %s133, %s136
      %p145 = scmp.eq.s32.totalorder %s20, 1
      %p146 = por %p144, %p145
      %p147 = scmp.ne.s32.totalorder %s136, %s137
      %p148 = scmp.eq.s32.totalorder %s20, 0
      %p149 = por %p147, %p148
      %p150 = scmp.ne.s32.totalorder %s136, %s137
      %p151 = scmp.eq.s32.totalorder %s21, 1
      %p152 = por %p150, %p151
      %p154 = scmp.ne.s32.totalorder %s137, %s153
      %p155 = scmp.eq.s32.totalorder %s21, 0
      %p156 = por %p154, %p155
      %s157 = ssub.s32 %s23, %s30
      %s158 = ssub.s32 %s22, %s34
      %s159 = sor.u32 %s157, %s158
      %p160 = scmp.eq.s32.totalorder %s159, 0
      %s162 = sadd.s32 %s161, 1
      %s163 = scalar_select %p160, %s161, %s162
      %p166 = pneg %p160
      %p167 = scmp.eq.s32.totalorder %s15, 1
      %p168 = por %p166, %p167
      %p169 = scmp.ne.s32.totalorder %s161, %s164
      %p170 = scmp.eq.s32.totalorder %s15, 0
      %p171 = por %p169, %p170
      %p172 = scmp.ne.s32.totalorder %s161, %s164
      %p173 = scmp.eq.s32.totalorder %s20, 1
      %p174 = por %p172, %p173
      %p175 = scmp.ne.s32.totalorder %s164, %s165
      %p176 = scmp.eq.s32.totalorder %s20, 0
      %p177 = por %p175, %p176
      %p178 = scmp.ne.s32.totalorder %s164, %s165
      %p179 = scmp.eq.s32.totalorder %s21, 1
      %p180 = por %p178, %p179
      %p182 = scmp.ne.s32.totalorder %s165, %s181
      %p183 = scmp.eq.s32.totalorder %s21, 0
      %p184 = por %p182, %p183
      %p185 = scmp.le.s32.totalorder 1, %s15
      %p186 = scmp.lt.s32.totalorder %s15, 3
      %p187 = pnand %p185, %p186
      %p188 = pneg %p187
      // Predicated region
      $region9: #{tpu_custom_call.1} parent=5 // pred_check
        _
      $region10: #{tpu_custom_call.1} parent=5 // pred_check_branch
        %190 = sbr.rel (%p187) target = $region12
      $region11: #{tpu_custom_call.1} parent=5 // pred_region
        %s191 = ssub.s32 %s15, 1
        // Predicated region
        $region13: #{tpu_custom_call.1} parent=11 // pred_check
          %p192 = pneg %p53
        $region14: #{tpu_custom_call.1} parent=11 // pred_check_branch
          %194 = sbr.rel (%p192) target = $region16
        $region15: #{tpu_custom_call.1} parent=11 // pred_region
          %s195 = smul.u32 2, %s24
          %197 = vsyncadd [#allocation3], 0
          %s198 = smul.addr %s195, 8
          %s199 = scalar_lea.hbm %s0, %s198
          %s200 = sshll.u32 %s199, 4
          %s201 = int_to_ptr.hbm [resolvable:$true] %s200
          %s202 = sshll.u32 [#allocation2], 4
          %s203 = int_to_ptr.vmem [resolvable:$true] %s202
          %208 = dma.hbm_to_vmem [thread:$0]  %s201, 4096, %s203, [#allocation3], 256, 256, 16
        $region16: #{tpu_custom_call.1} parent=11 // pred_fallthru
          _
        // Predicated region
        $region17: #{tpu_custom_call.1} parent=11 // pred_check
          %p209 = pneg %p74
        $region18: #{tpu_custom_call.1} parent=11 // pred_check_branch
          %211 = sbr.rel (%p209) target = $region20
        $region19: #{tpu_custom_call.1} parent=11 // pred_region
          _
        $region20: #{tpu_custom_call.1} parent=11 // pred_fallthru
          _
        // Predicated region
        $region21: #{tpu_custom_call.1} parent=11 // pred_check
          %p212 = pneg %p95
        $region22: #{tpu_custom_call.1} parent=11 // pred_check_branch
          %214 = sbr.rel (%p212) target = $region24
        $region23: #{tpu_custom_call.1} parent=11 // pred_region
          _
        $region24: #{tpu_custom_call.1} parent=11 // pred_fallthru
          _
      $region12: #{tpu_custom_call.1} parent=5 // pred_fallthru
        _
      %p215 = scmp.lt.s32.totalorder %s15, 2
      // Predicated region
      $region25: #{tpu_custom_call.1} parent=5 // pred_check
        %p216 = pneg %p215
      $region26: #{tpu_custom_call.1} parent=5 // pred_check_branch
        %218 = sbr.rel (%p216) target = $region28
      $region27: #{tpu_custom_call.1} parent=5 // pred_region
        // Predicated region
        $region29: #{tpu_custom_call.1} parent=27 // pred_check
          %p219 = pneg %p115
        $region30: #{tpu_custom_call.1} parent=27 // pred_check_branch
          %221 = sbr.rel (%p219) target = $region32
        $region31: #{tpu_custom_call.1} parent=27 // pred_region
          %p222 = scmp.lt.s32.totalorder %s23, 1
          %s223 = scalar_select %p222, %s23, 1
          %s224 = scalar_lea.vmem %s3, %s223
        $region32: #{tpu_custom_call.1} parent=27 // pred_fallthru
          _
        // Predicated region
        $region33: #{tpu_custom_call.1} parent=27 // pred_check
          %p225 = pneg %p143
        $region34: #{tpu_custom_call.1} parent=27 // pred_check_branch
          %227 = sbr.rel (%p225) target = $region36
        $region35: #{tpu_custom_call.1} parent=27 // pred_region
          %s228 = smul.u32 2, %s22
          %p229 = scmp.lt.s32.totalorder %s23, 1
          %s230 = scalar_select %p229, %s23, 1
          %p231 = scmp.lt.s32.totalorder %s228, 1
          %s232 = scalar_select %p231, %s228, 1
          %s233 = smul.addr %s230, 2
          %s234 = sadd.s32 %s232, %s233
          %s235 = scalar_lea.vmem %s4, %s234
          %s236 = smul.u32 2, %s22
        $region36: #{tpu_custom_call.1} parent=27 // pred_fallthru
          _
      $region28: #{tpu_custom_call.1} parent=5 // pred_fallthru
        _
      %p237 = scmp.le.s32.totalorder 1, %s15
      %p238 = scmp.lt.s32.totalorder %s15, 3
      %p239 = pnand %p237, %p238
      %p240 = pneg %p239
      // Predicated region
      $region37: #{tpu_custom_call.1} parent=5 // pred_check
        _
      $region38: #{tpu_custom_call.1} parent=5 // pred_check_branch
        %242 = sbr.rel (%p239) target = $region40
      $region39: #{tpu_custom_call.1} parent=5 // pred_region
        %s243 = ssub.s32 %s15, 1
        // Predicated region
        $region41: #{tpu_custom_call.1} parent=39 // pred_check
          %p244 = pneg %p53
        $region42: #{tpu_custom_call.1} parent=39 // pred_check_branch
          %246 = sbr.rel (%p244) target = $region44
        $region43: #{tpu_custom_call.1} parent=39 // pred_region
          %248 = dma.done [#allocation3], 4096
        $region44: #{tpu_custom_call.1} parent=39 // pred_fallthru
          _
        %p249 = pneg %p53
        %p250 = pneg %p50
        %p251 = pneg %p74
        %p252 = pneg %p71
        %p253 = pneg %p95
        %p254 = pneg %p92
        %p255 = scmp.lt.s32.totalorder %s25, 1
        %s256 = scalar_select %p255, %s25, 1
        %s257 = scalar_lea.vmem %s3, %s256
        %p258 = pneg %p121
        %p259 = pneg %p118
        %s260 = smul.u32 2, %s24
        %p261 = scmp.lt.s32.totalorder %s25, 1
        %s262 = scalar_select %p261, %s25, 1
        %p263 = scmp.lt.s32.totalorder %s260, 1
        %s264 = scalar_select %p263, %s260, 1
        %s265 = smul.addr %s262, 2
        %s266 = sadd.s32 %s264, %s265
        %s267 = scalar_lea.vmem %s4, %s266
        %p268 = pneg %p149
        %p269 = pneg %p146
        %p270 = pneg %p177
        %p271 = pneg %p174
        %s272 = sand.u32 %s164, 1
        %s273 = scalar_lea.sflag [#allocation4], %s272
        %s274 = sand.u32 %s164, 1
        %s275 = smul.addr %s274, 384
        %s276 = scalar_lea.vmem [#allocation5], %s275
        %s277 = smul.u32 2, %s24
        %p278 = scmp.lt.s32.totalorder %s25, 1
        %s279 = scalar_select %p278, %s25, 1
        %s280 = scalar_lea.vmem %s3, %s279
        %s281 = smul.u32 2, %s24
        %p282 = scmp.lt.s32.totalorder %s25, 1
        %s283 = scalar_select %p282, %s25, 1
        %p284 = scmp.lt.s32.totalorder %s281, 1
        %s285 = scalar_select %p284, %s281, 1
        %s286 = smul.addr %s283, 2
        %s287 = sadd.s32 %s285, %s286
        %s288 = scalar_lea.vmem %s4, %s287
        %s289 = smul.u32 2, %s24
        %s290 = smul.u32 2, %s24
        %v291 = vld [vmem:[#allocation2] sm:$0xff]
        %v292 = vld [vmem:[#allocation2 + $0x8] sm:$0xff]
        %v293 = vld [vmem:[#allocation2 + $0x10] sm:$0xff]
        %v294 = vld [vmem:[#allocation2 + $0x18] sm:$0xff]
        %v295 = vld [vmem:[#allocation2 + $0x20] sm:$0xff]
        %v296 = vld [vmem:[#allocation2 + $0x28] sm:$0xff]
        %v297 = vld [vmem:[#allocation2 + $0x30] sm:$0xff]
        %v298 = vld [vmem:[#allocation2 + $0x38] sm:$0xff]
        %v299 = vld [vmem:[#allocation2 + $0x40] sm:$0xff]
        %v300 = vld [vmem:[#allocation2 + $0x48] sm:$0xff]
        %v301 = vld [vmem:[#allocation2 + $0x50] sm:$0xff]
        %v302 = vld [vmem:[#allocation2 + $0x58] sm:$0xff]
        %v303 = vld [vmem:[#allocation2 + $0x60] sm:$0xff]
        %v304 = vld [vmem:[#allocation2 + $0x68] sm:$0xff]
        %v305 = vld [vmem:[#allocation2 + $0x70] sm:$0xff]
        %v306 = vld [vmem:[#allocation2 + $0x78] sm:$0xff]
        %v307 = vld [vmem:[#allocation2 + $0x80] sm:$0xff]
        %v308 = vld [vmem:[#allocation2 + $0x88] sm:$0xff]
        %v309 = vld [vmem:[#allocation2 + $0x90] sm:$0xff]
        %v310 = vld [vmem:[#allocation2 + $0x98] sm:$0xff]
        %v311 = vld [vmem:[#allocation2 + $0xa0] sm:$0xff]
        %v312 = vld [vmem:[#allocation2 + $0xa8] sm:$0xff]
        %v313 = vld [vmem:[#allocation2 + $0xb0] sm:$0xff]
        %v314 = vld [vmem:[#allocation2 + $0xb8] sm:$0xff]
        %v315 = vld [vmem:[#allocation2 + $0xc0] sm:$0xff]
        %v316 = vld [vmem:[#allocation2 + $0xc8] sm:$0xff]
        %v317 = vld [vmem:[#allocation2 + $0xd0] sm:$0xff]
        %v318 = vld [vmem:[#allocation2 + $0xd8] sm:$0xff]
        %v319 = vld [vmem:[#allocation2 + $0xe0] sm:$0xff]
        %v320 = vld [vmem:[#allocation2 + $0xe8] sm:$0xff]
        %v321 = vld [vmem:[#allocation2 + $0xf0] sm:$0xff]
        %v322 = vld [vmem:[#allocation2 + $0xf8] sm:$0xff]
        %323 = vst [vmem:[%s276] sm:$0xff] %v291
        %324 = vst [vmem:[%s276 + $0x8] sm:$0xff] %v292
        %325 = vst [vmem:[%s276 + $0x10] sm:$0xff] %v293
        %326 = vst [vmem:[%s276 + $0x18] sm:$0xff] %v294
        %327 = vst [vmem:[%s276 + $0x20] sm:$0xff] %v295
        %328 = vst [vmem:[%s276 + $0x28] sm:$0xff] %v296
        %329 = vst [vmem:[%s276 + $0x30] sm:$0xff] %v297
        %330 = vst [vmem:[%s276 + $0x38] sm:$0xff] %v298
        %331 = vst [vmem:[%s276 + $0x40] sm:$0xff] %v299
        %332 = vst [vmem:[%s276 + $0x48] sm:$0xff] %v300
        %333 = vst [vmem:[%s276 + $0x50] sm:$0xff] %v301
        %334 = vst [vmem:[%s276 + $0x58] sm:$0xff] %v302
        %335 = vst [vmem:[%s276 + $0x60] sm:$0xff] %v303
        %336 = vst [vmem:[%s276 + $0x68] sm:$0xff] %v304
        %337 = vst [vmem:[%s276 + $0x70] sm:$0xff] %v305
        %338 = vst [vmem:[%s276 + $0x78] sm:$0xff] %v306
        %339 = vst [vmem:[%s276 + $0x80] sm:$0xff] %v307
        %340 = vst [vmem:[%s276 + $0x88] sm:$0xff] %v308
        %341 = vst [vmem:[%s276 + $0x90] sm:$0xff] %v309
        %342 = vst [vmem:[%s276 + $0x98] sm:$0xff] %v310
        %343 = vst [vmem:[%s276 + $0xa0] sm:$0xff] %v311
        %344 = vst [vmem:[%s276 + $0xa8] sm:$0xff] %v312
        %345 = vst [vmem:[%s276 + $0xb0] sm:$0xff] %v313
        %346 = vst [vmem:[%s276 + $0xb8] sm:$0xff] %v314
        %347 = vst [vmem:[%s276 + $0xc0] sm:$0xff] %v315
        %348 = vst [vmem:[%s276 + $0xc8] sm:$0xff] %v316
        %349 = vst [vmem:[%s276 + $0xd0] sm:$0xff] %v317
        %350 = vst [vmem:[%s276 + $0xd8] sm:$0xff] %v318
        %351 = vst [vmem:[%s276 + $0xe0] sm:$0xff] %v319
        %352 = vst [vmem:[%s276 + $0xe8] sm:$0xff] %v320
        %353 = vst [vmem:[%s276 + $0xf0] sm:$0xff] %v321
        %354 = vst [vmem:[%s276 + $0xf8] sm:$0xff] %v322
        %v355 = vld [vmem:[%s288] sm:$0x3]
        %v356 = vld [vmem:[%s280] sm:$0x1]
        %358 = vset.pattern.permute.xlu0 0
        %359 = vperm.xlu0 %358, %v356
        %v360 = vpop.permute.xlu0 %359
        %v362 = vperm.slane %v360, 0
        %v363 = vmul.f32 %v355, %v362
        %v364 = vld [vmem:[%s1] sm:$0xff]
        %v365 = vld [vmem:[%s1 + $0x8] sm:$0xff]
        %v366 = vld [vmem:[%s1 + $0x10] sm:$0xff]
        %v367 = vld [vmem:[%s1 + $0x18] sm:$0xff]
        %v368 = vld [vmem:[%s1 + $0x20] sm:$0xff]
        %v369 = vld [vmem:[%s1 + $0x28] sm:$0xff]
        %v370 = vld [vmem:[%s1 + $0x30] sm:$0xff]
        %v371 = vld [vmem:[%s1 + $0x38] sm:$0xff]
        %v373 = vperm.slane %v363, 0
        %v374 = vperm.slane %v363, 1
        %378 = vset.pattern.permute.xlu0 0
        %379 = vperm.xlu0 %378, %v364
        %v380 = vpop.permute.xlu0 %379
        %383 = vset.pattern.permute.xlu0 0
        %384 = vperm.xlu0 %383, %v365
        %v385 = vpop.permute.xlu0 %384
        %388 = vset.pattern.permute.xlu0 0
        %389 = vperm.xlu0 %388, %v366
        %v390 = vpop.permute.xlu0 %389
        %393 = vset.pattern.permute.xlu0 0
        %394 = vperm.xlu0 %393, %v367
        %v395 = vpop.permute.xlu0 %394
        %398 = vset.pattern.permute.xlu0 0
        %399 = vperm.xlu0 %398, %v368
        %v400 = vpop.permute.xlu0 %399
        %403 = vset.pattern.permute.xlu0 0
        %404 = vperm.xlu0 %403, %v369
        %v405 = vpop.permute.xlu0 %404
        %408 = vset.pattern.permute.xlu0 0
        %409 = vperm.xlu0 %408, %v370
        %v410 = vpop.permute.xlu0 %409
        %413 = vset.pattern.permute.xlu0 0
        %414 = vperm.xlu0 %413, %v371
        %v415 = vpop.permute.xlu0 %414
        %v417 = vmul.f32 %v373, %v380
        %v418 = vmul.f32 %v374, %v380
        %v419 = vmul.f32 %v373, %v385
        %v420 = vmul.f32 %v374, %v385
        %v421 = vmul.f32 %v373, %v390
        %v422 = vmul.f32 %v374, %v390
        %v423 = vmul.f32 %v373, %v395
        %v424 = vmul.f32 %v374, %v395
        %v425 = vmul.f32 %v373, %v400
        %v426 = vmul.f32 %v374, %v400
        %v427 = vmul.f32 %v373, %v405
        %v428 = vmul.f32 %v374, %v405
        %v429 = vmul.f32 %v373, %v410
        %v430 = vmul.f32 %v374, %v410
        %v431 = vmul.f32 %v373, %v415
        %v432 = vmul.f32 %v374, %v415
        %v433 = vld [vmem:[%s2] sm:$0xff]
        %v434 = vld [vmem:[%s2 + $0x8] sm:$0xff]
        %v435 = vld [vmem:[%s2 + $0x10] sm:$0xff]
        %v436 = vld [vmem:[%s2 + $0x18] sm:$0xff]
        %v437 = vld [vmem:[%s2 + $0x20] sm:$0xff]
        %v438 = vld [vmem:[%s2 + $0x28] sm:$0xff]
        %v439 = vld [vmem:[%s2 + $0x30] sm:$0xff]
        %v440 = vld [vmem:[%s2 + $0x38] sm:$0xff]
        %442 = vset.pattern.permute.xlu0 0
        %443 = vperm.xlu0 %442, %v433
        %v444 = vpop.permute.xlu0 %443
        %447 = vset.pattern.permute.xlu0 0
        %448 = vperm.xlu0 %447, %v434
        %v449 = vpop.permute.xlu0 %448
        %452 = vset.pattern.permute.xlu0 0
        %453 = vperm.xlu0 %452, %v435
        %v454 = vpop.permute.xlu0 %453
        %457 = vset.pattern.permute.xlu0 0
        %458 = vperm.xlu0 %457, %v436
        %v459 = vpop.permute.xlu0 %458
        %462 = vset.pattern.permute.xlu0 0
        %463 = vperm.xlu0 %462, %v437
        %v464 = vpop.permute.xlu0 %463
        %467 = vset.pattern.permute.xlu0 0
        %468 = vperm.xlu0 %467, %v438
        %v469 = vpop.permute.xlu0 %468
        %472 = vset.pattern.permute.xlu0 0
        %473 = vperm.xlu0 %472, %v439
        %v474 = vpop.permute.xlu0 %473
        %477 = vset.pattern.permute.xlu0 0
        %478 = vperm.xlu0 %477, %v440
        %v479 = vpop.permute.xlu0 %478
        %v481 = vadd.f32 %v417, %v444
        %v482 = vadd.f32 %v418, %v444
        %v483 = vadd.f32 %v419, %v449
        %v484 = vadd.f32 %v420, %v449
        %v485 = vadd.f32 %v421, %v454
        %v486 = vadd.f32 %v422, %v454
        %v487 = vadd.f32 %v423, %v459
        %v488 = vadd.f32 %v424, %v459
        %v489 = vadd.f32 %v425, %v464
        %v490 = vadd.f32 %v426, %v464
        %v491 = vadd.f32 %v427, %v469
        %v492 = vadd.f32 %v428, %v469
        %v493 = vadd.f32 %v429, %v474
        %v494 = vadd.f32 %v430, %v474
        %v495 = vadd.f32 %v431, %v479
        %v496 = vadd.f32 %v432, %v479
        %v497 = vand.u32 2147483647, %v481
        %vm498 = vcmp.le.f32.partialorder %v497, 0.7853982
        %vm499 = vcmp.lt.s32.totalorder %v481, 0
        %v500 = vand.u32 %v481, 2139095040
        %v501 = vshrl.u32 %v500, 23
        %v502 = vsub.s32 %v501, 127
        %v503 = vand.u32 2147483647, %v481
        %v504 = vand.u32 %v503, 8388607
        %v505 = vor.u32 %v504, 8388608
        %v506 = vsub.s32 0, %v505
        %v507 = vadd.s32 %v502, 1
        %vm508 = vcmp.gt.s32.totalorder %v507, 0
        %v509 = vsel %vm508, %v507, 0
        %v510 = vshrl.u32 %v509, 5
        %v511 = vand.u32 %v509, 31
        %v512 = vsub.s32 32, %v511
        %v513 = vshrl.u32 683565275, %v512
        %v514 = vshll.u32 683565275, %v511
        %v515 = vshrl.u32 2475754826, %v512
        %v516 = vor.u32 %v514, %v515
        %v517 = vshll.u32 2475754826, %v511
        %v518 = vshrl.u32 2131351028, %v512
        %v519 = vor.u32 %v517, %v518
        %v520 = vshll.u32 2131351028, %v511
        %v521 = vshrl.u32 2102212464, %v512
        %v522 = vor.u32 %v520, %v521
        %v523 = vshll.u32 2102212464, %v511
        %v524 = vshrl.u32 920167782, %v512
        %v525 = vor.u32 %v523, %v524
        %v526 = vshll.u32 920167782, %v511
        %v527 = vshrl.u32 1326507024, %v512
        %v528 = vor.u32 %v526, %v527
        %vm529 = vcmp.lt.s32.totalorder %v510, 1
        %vm530 = vcmp.lt.s32.totalorder %v510, 2
        %vm531 = vcmp.lt.s32.totalorder %v510, 3
        %vm532 = vcmp.lt.s32.totalorder %v510, 4
        %v533 = vsel %vm529, %v513, %v516
        %v534 = vsel %vm532, %v522, 2102212464
        %v535 = vsel %vm531, %v519, %v534
        %v536 = vsel %vm530, %v533, %v535
        %v537 = vsel %vm529, %v516, %v519
        %v538 = vsel %vm532, %v525, 920167782
        %v539 = vsel %vm531, %v522, %v538
        %v540 = vsel %vm530, %v537, %v539
        %v541 = vsel %vm529, %v519, %v522
        %v542 = vsel %vm532, %v528, 1326507024
        %v543 = vsel %vm531, %v525, %v542
        %v544 = vsel %vm530, %v541, %v543
        %v545 = vshll.u32 %v505, 8
        %v546 = vand.u32 %v545, 65535
        %v547 = vshrl.u32 %v545, 16
        %v548 = vand.u32 %v544, 65535
        %v549 = vshrl.u32 %v544, 16
        %v550 = vmul.u32 %v546, %v548
        %v551 = vmul.u32 %v546, %v549
        %v552 = vmul.u32 %v547, %v548
        %v553 = vmul.u32 %v547, %v549
        %v554 = vshll.u32 %v551, 16
        %v555 = vshrl.u32 %v551, 16
        %v556 = vshll.u32 %v552, 16
        %v557 = vshrl.u32 %v552, 16
        %vm558 = vc.u32 %v550, %v554
        %v559 = vsel %vm558, 1, 0
        %v560 = vadd.s32 %v550, %v554
        %v561 = vadd.s32 %v553, %v559
        %vm562 = vc.u32 %v560, %v556
        %v563 = vsel %vm562, 1, 0
        %v564 = vadd.s32 %v560, %v556
        %v565 = vadd.s32 %v561, %v563
        %v566 = vadd.s32 %v565, %v555
        %v567 = vadd.s32 %v566, %v557
        %v568 = vand.u32 %v545, 65535
        %v569 = vshrl.u32 %v545, 16
        %v570 = vand.u32 %v540, 65535
        %v571 = vshrl.u32 %v540, 16
        %v572 = vmul.u32 %v568, %v570
        %v573 = vmul.u32 %v568, %v571
        %v574 = vmul.u32 %v569, %v570
        %v575 = vmul.u32 %v569, %v571
        %v576 = vshll.u32 %v573, 16
        %v577 = vshrl.u32 %v573, 16
        %v578 = vshll.u32 %v574, 16
        %v579 = vshrl.u32 %v574, 16
        %vm580 = vc.u32 %v572, %v576
        %v581 = vsel %vm580, 1, 0
        %v582 = vadd.s32 %v572, %v576
        %v583 = vadd.s32 %v575, %v581
        %vm584 = vc.u32 %v582, %v578
        %v585 = vsel %vm584, 1, 0
        %v586 = vadd.s32 %v582, %v578
        %v587 = vadd.s32 %v583, %v585
        %v588 = vadd.s32 %v587, %v577
        %v589 = vadd.s32 %v588, %v579
        %v590 = vmul.u32 %v545, %v536
        %v591 = vadd.s32 %v567, %v586
        %vm592 = vc.u32 %v567, %v586
        %v593 = vadd.s32 %v589, 1
        %v594 = vsel %vm592, %v593, %v589
        %v595 = vadd.s32 %v590, %v594
        %v596 = vadd.s32 %v595, 536870912
        %v597 = vshrl.u32 %v596, 30
        %v598 = vshll.u32 %v597, 30
        %v599 = vsub.s32 %v595, %v598
        %vm600 = vcmp.lt.s32.totalorder %v599, 0
        %v601 = vsub.s32 0, %v599
        %v602 = vsel %vm600, %v601, %v599
        %v603 = vclz %v602
        %v604 = vsub.s32 %v603, 2
        %vm605 = vcmp.gt.s32.totalorder 0, %v604
        %v606 = vsel %vm605, 0, %v604
        %v607 = vsub.s32 32, %v606
        %v608 = vshll.u32 %v599, %v606
        %v609 = vshrl.u32 %v591, %v607
        %v610 = vor.u32 %v608, %v609
        %v611 = vsub.s32 4294967266, %v606
        %v612 = vadd.s32 %v611, 127
        %v613 = vshll.u32 %v612, 23
        %v614 = vor.u32 4788187, %v613
        %v615 = vand.u32 2147483647, %v614
        %v617 = vcvt.s32.f32 %v610
        %v618 = vmul.f32 %v617, %v615
        %v619 = vxor.u32 %v618, 2147483648
        %v620 = vsel %vm499, %v619, %v618
        %v621 = vsub.s32 4, %v597
        %v622 = vsel %vm499, %v621, %v597
        %v623 = vsel %vm498, %v481, %v620
        %v624 = vsel %vm498, 0, %v622
        %v625 = vmul.f32 %v623, %v623
        %v626 = vmul.f32 %v625, -0.001358992
        %v627 = vadd.f32 %v626, 0.041655596
        %v628 = vmul.f32 %v625, %v627
        %v629 = vadd.f32 %v628, -0.4999988
        %v630 = vmul.f32 %v625, %v629
        %v631 = vadd.f32 1.0, %v630
        %v632 = vmul.f32 %v623, %v623
        %v633 = vmul.f32 %v632, -0.00019511016
        %v634 = vadd.f32 %v633, 0.008332121
        %v635 = vmul.f32 %v632, %v634
        %v636 = vadd.f32 %v635, -0.16666654
        %v637 = vmul.f32 %v632, %v636
        %v638 = vadd.f32 %v637, 1.0
        %v639 = vmul.f32 %v638, %v623
        %vm640 = vweird.f32 %v481
        %v641 = vadd.s32 %v624, 3
        %v642 = vand.u32 %v641, 3
        %vm643 = vcmp.lt.s32.totalorder %v642, 2
        %vm644 = vcmp.eq.s32.totalorder %v642, 0
        %v645 = vxor.u32 %v639, 2147483648
        %v646 = vsel %vm644, %v631, %v645
        %vm647 = vcmp.eq.s32.totalorder %v642, 2
        %v648 = vxor.u32 %v631, 2147483648
        %v649 = vsel %vm647, %v648, %v639
        %v650 = vsel %vm643, %v646, %v649
        %v651 = vsel %vm640, nan, %v650
        %v652 = vand.u32 2147483647, %v482
        %vm653 = vcmp.le.f32.partialorder %v652, 0.7853982
        %vm654 = vcmp.lt.s32.totalorder %v482, 0
        %v655 = vand.u32 %v482, 2139095040
        %v656 = vshrl.u32 %v655, 23
        %v657 = vsub.s32 %v656, 127
        %v658 = vand.u32 2147483647, %v482
        %v659 = vand.u32 %v658, 8388607
        %v660 = vor.u32 %v659, 8388608
        %v661 = vsub.s32 0, %v660
        %v662 = vadd.s32 %v657, 1
        %vm663 = vcmp.gt.s32.totalorder %v662, 0
        %v664 = vsel %vm663, %v662, 0
        %v665 = vshrl.u32 %v664, 5
        %v666 = vand.u32 %v664, 31
        %v667 = vsub.s32 32, %v666
        %v668 = vshrl.u32 683565275, %v667
        %v669 = vshll.u32 683565275, %v666
        %v670 = vshrl.u32 2475754826, %v667
        %v671 = vor.u32 %v669, %v670
        %v672 = vshll.u32 2475754826, %v666
        %v673 = vshrl.u32 2131351028, %v667
        %v674 = vor.u32 %v672, %v673
        %v675 = vshll.u32 2131351028, %v666
        %v676 = vshrl.u32 2102212464, %v667
        %v677 = vor.u32 %v675, %v676
        %v678 = vshll.u32 2102212464, %v666
        %v679 = vshrl.u32 920167782, %v667
        %v680 = vor.u32 %v678, %v679
        %v681 = vshll.u32 920167782, %v666
        %v682 = vshrl.u32 1326507024, %v667
        %v683 = vor.u32 %v681, %v682
        %vm684 = vcmp.lt.s32.totalorder %v665, 1
        %vm685 = vcmp.lt.s32.totalorder %v665, 2
        %vm686 = vcmp.lt.s32.totalorder %v665, 3
        %vm687 = vcmp.lt.s32.totalorder %v665, 4
        %v688 = vsel %vm684, %v668, %v671
        %v689 = vsel %vm687, %v677, 2102212464
        %v690 = vsel %vm686, %v674, %v689
        %v691 = vsel %vm685, %v688, %v690
        %v692 = vsel %vm684, %v671, %v674
        %v693 = vsel %vm687, %v680, 920167782
        %v694 = vsel %vm686, %v677, %v693
        %v695 = vsel %vm685, %v692, %v694
        %v696 = vsel %vm684, %v674, %v677
        %v697 = vsel %vm687, %v683, 1326507024
        %v698 = vsel %vm686, %v680, %v697
        %v699 = vsel %vm685, %v696, %v698
        %v700 = vshll.u32 %v660, 8
        %v701 = vand.u32 %v700, 65535
        %v702 = vshrl.u32 %v700, 16
        %v703 = vand.u32 %v699, 65535
        %v704 = vshrl.u32 %v699, 16
        %v705 = vmul.u32 %v701, %v703
        %v706 = vmul.u32 %v701, %v704
        %v707 = vmul.u32 %v702, %v703
        %v708 = vmul.u32 %v702, %v704
        %v709 = vshll.u32 %v706, 16
        %v710 = vshrl.u32 %v706, 16
        %v711 = vshll.u32 %v707, 16
        %v712 = vshrl.u32 %v707, 16
        %vm713 = vc.u32 %v705, %v709
        %v714 = vsel %vm713, 1, 0
        %v715 = vadd.s32 %v705, %v709
        %v716 = vadd.s32 %v708, %v714
        %vm717 = vc.u32 %v715, %v711
        %v718 = vsel %vm717, 1, 0
        %v719 = vadd.s32 %v715, %v711
        %v720 = vadd.s32 %v716, %v718
        %v721 = vadd.s32 %v720, %v710
        %v722 = vadd.s32 %v721, %v712
        %v723 = vand.u32 %v700, 65535
        %v724 = vshrl.u32 %v700, 16
        %v725 = vand.u32 %v695, 65535
        %v726 = vshrl.u32 %v695, 16
        %v727 = vmul.u32 %v723, %v725
        %v728 = vmul.u32 %v723, %v726
        %v729 = vmul.u32 %v724, %v725
        %v730 = vmul.u32 %v724, %v726
        %v731 = vshll.u32 %v728, 16
        %v732 = vshrl.u32 %v728, 16
        %v733 = vshll.u32 %v729, 16
        %v734 = vshrl.u32 %v729, 16
        %vm735 = vc.u32 %v727, %v731
        %v736 = vsel %vm735, 1, 0
        %v737 = vadd.s32 %v727, %v731
        %v738 = vadd.s32 %v730, %v736
        %vm739 = vc.u32 %v737, %v733
        %v740 = vsel %vm739, 1, 0
        %v741 = vadd.s32 %v737, %v733
        %v742 = vadd.s32 %v738, %v740
        %v743 = vadd.s32 %v742, %v732
        %v744 = vadd.s32 %v743, %v734
        %v745 = vmul.u32 %v700, %v691
        %v746 = vadd.s32 %v722, %v741
        %vm747 = vc.u32 %v722, %v741
        %v748 = vadd.s32 %v744, 1
        %v749 = vsel %vm747, %v748, %v744
        %v750 = vadd.s32 %v745, %v749
        %v751 = vadd.s32 %v750, 536870912
        %v752 = vshrl.u32 %v751, 30
        %v753 = vshll.u32 %v752, 30
        %v754 = vsub.s32 %v750, %v753
        %vm755 = vcmp.lt.s32.totalorder %v754, 0
        %v756 = vsub.s32 0, %v754
        %v757 = vsel %vm755, %v756, %v754
        %v758 = vclz %v757
        %v759 = vsub.s32 %v758, 2
        %vm760 = vcmp.gt.s32.totalorder 0, %v759
        %v761 = vsel %vm760, 0, %v759
        %v762 = vsub.s32 32, %v761
        %v763 = vshll.u32 %v754, %v761
        %v764 = vshrl.u32 %v746, %v762
        %v765 = vor.u32 %v763, %v764
        %v766 = vsub.s32 4294967266, %v761
        %v767 = vadd.s32 %v766, 127
        %v768 = vshll.u32 %v767, 23
        %v769 = vor.u32 4788187, %v768
        %v770 = vand.u32 2147483647, %v769
        %v772 = vcvt.s32.f32 %v765
        %v773 = vmul.f32 %v772, %v770
        %v774 = vxor.u32 %v773, 2147483648
        %v775 = vsel %vm654, %v774, %v773
        %v776 = vsub.s32 4, %v752
        %v777 = vsel %vm654, %v776, %v752
        %v778 = vsel %vm653, %v482, %v775
        %v779 = vsel %vm653, 0, %v777
        %v780 = vmul.f32 %v778, %v778
        %v781 = vmul.f32 %v780, -0.001358992
        %v782 = vadd.f32 %v781, 0.041655596
        %v783 = vmul.f32 %v780, %v782
        %v784 = vadd.f32 %v783, -0.4999988
        %v785 = vmul.f32 %v780, %v784
        %v786 = vadd.f32 1.0, %v785
        %v787 = vmul.f32 %v778, %v778
        %v788 = vmul.f32 %v787, -0.00019511016
        %v789 = vadd.f32 %v788, 0.008332121
        %v790 = vmul.f32 %v787, %v789
        %v791 = vadd.f32 %v790, -0.16666654
        %v792 = vmul.f32 %v787, %v791
        %v793 = vadd.f32 %v792, 1.0
        %v794 = vmul.f32 %v793, %v778
        %vm795 = vweird.f32 %v482
        %v796 = vadd.s32 %v779, 3
        %v797 = vand.u32 %v796, 3
        %vm798 = vcmp.lt.s32.totalorder %v797, 2
        %vm799 = vcmp.eq.s32.totalorder %v797, 0
        %v800 = vxor.u32 %v794, 2147483648
        %v801 = vsel %vm799, %v786, %v800
        %vm802 = vcmp.eq.s32.totalorder %v797, 2
        %v803 = vxor.u32 %v786, 2147483648
        %v804 = vsel %vm802, %v803, %v794
        %v805 = vsel %vm798, %v801, %v804
        %v806 = vsel %vm795, nan, %v805
        %v807 = vand.u32 2147483647, %v483
        %vm808 = vcmp.le.f32.partialorder %v807, 0.7853982
        %vm809 = vcmp.lt.s32.totalorder %v483, 0
        %v810 = vand.u32 %v483, 2139095040
        %v811 = vshrl.u32 %v810, 23
        %v812 = vsub.s32 %v811, 127
        %v813 = vand.u32 2147483647, %v483
        %v814 = vand.u32 %v813, 8388607
        %v815 = vor.u32 %v814, 8388608
        %v816 = vsub.s32 0, %v815
        %v817 = vadd.s32 %v812, 1
        %vm818 = vcmp.gt.s32.totalorder %v817, 0
        %v819 = vsel %vm818, %v817, 0
        %v820 = vshrl.u32 %v819, 5
        %v821 = vand.u32 %v819, 31
        %v822 = vsub.s32 32, %v821
        %v823 = vshrl.u32 683565275, %v822
        %v824 = vshll.u32 683565275, %v821
        %v825 = vshrl.u32 2475754826, %v822
        %v826 = vor.u32 %v824, %v825
        %v827 = vshll.u32 2475754826, %v821
        %v828 = vshrl.u32 2131351028, %v822
        %v829 = vor.u32 %v827, %v828
        %v830 = vshll.u32 2131351028, %v821
        %v831 = vshrl.u32 2102212464, %v822
        %v832 = vor.u32 %v830, %v831
        %v833 = vshll.u32 2102212464, %v821
        %v834 = vshrl.u32 920167782, %v822
        %v835 = vor.u32 %v833, %v834
        %v836 = vshll.u32 920167782, %v821
        %v837 = vshrl.u32 1326507024, %v822
        %v838 = vor.u32 %v836, %v837
        %vm839 = vcmp.lt.s32.totalorder %v820, 1
        %vm840 = vcmp.lt.s32.totalorder %v820, 2
        %vm841 = vcmp.lt.s32.totalorder %v820, 3
        %vm842 = vcmp.lt.s32.totalorder %v820, 4
        %v843 = vsel %vm839, %v823, %v826
        %v844 = vsel %vm842, %v832, 2102212464
        %v845 = vsel %vm841, %v829, %v844
        %v846 = vsel %vm840, %v843, %v845
        %v847 = vsel %vm839, %v826, %v829
        %v848 = vsel %vm842, %v835, 920167782
        %v849 = vsel %vm841, %v832, %v848
        %v850 = vsel %vm840, %v847, %v849
        %v851 = vsel %vm839, %v829, %v832
        %v852 = vsel %vm842, %v838, 1326507024
        %v853 = vsel %vm841, %v835, %v852
        %v854 = vsel %vm840, %v851, %v853
        %v855 = vshll.u32 %v815, 8
        %v856 = vand.u32 %v855, 65535
        %v857 = vshrl.u32 %v855, 16
        %v858 = vand.u32 %v854, 65535
        %v859 = vshrl.u32 %v854, 16
        %v860 = vmul.u32 %v856, %v858
        %v861 = vmul.u32 %v856, %v859
        %v862 = vmul.u32 %v857, %v858
        %v863 = vmul.u32 %v857, %v859
        %v864 = vshll.u32 %v861, 16
        %v865 = vshrl.u32 %v861, 16
        %v866 = vshll.u32 %v862, 16
        %v867 = vshrl.u32 %v862, 16
        %vm868 = vc.u32 %v860, %v864
        %v869 = vsel %vm868, 1, 0
        %v870 = vadd.s32 %v860, %v864
        %v871 = vadd.s32 %v863, %v869
        %vm872 = vc.u32 %v870, %v866
        %v873 = vsel %vm872, 1, 0
        %v874 = vadd.s32 %v870, %v866
        %v875 = vadd.s32 %v871, %v873
        %v876 = vadd.s32 %v875, %v865
        %v877 = vadd.s32 %v876, %v867
        %v878 = vand.u32 %v855, 65535
        %v879 = vshrl.u32 %v855, 16
        %v880 = vand.u32 %v850, 65535
        %v881 = vshrl.u32 %v850, 16
        %v882 = vmul.u32 %v878, %v880
        %v883 = vmul.u32 %v878, %v881
        %v884 = vmul.u32 %v879, %v880
        %v885 = vmul.u32 %v879, %v881
        %v886 = vshll.u32 %v883, 16
        %v887 = vshrl.u32 %v883, 16
        %v888 = vshll.u32 %v884, 16
        %v889 = vshrl.u32 %v884, 16
        %vm890 = vc.u32 %v882, %v886
        %v891 = vsel %vm890, 1, 0
        %v892 = vadd.s32 %v882, %v886
        %v893 = vadd.s32 %v885, %v891
        %vm894 = vc.u32 %v892, %v888
        %v895 = vsel %vm894, 1, 0
        %v896 = vadd.s32 %v892, %v888
        %v897 = vadd.s32 %v893, %v895
        %v898 = vadd.s32 %v897, %v887
        %v899 = vadd.s32 %v898, %v889
        %v900 = vmul.u32 %v855, %v846
        %v901 = vadd.s32 %v877, %v896
        %vm902 = vc.u32 %v877, %v896
        %v903 = vadd.s32 %v899, 1
        %v904 = vsel %vm902, %v903, %v899
        %v905 = vadd.s32 %v900, %v904
        %v906 = vadd.s32 %v905, 536870912
        %v907 = vshrl.u32 %v906, 30
        %v908 = vshll.u32 %v907, 30
        %v909 = vsub.s32 %v905, %v908
        %vm910 = vcmp.lt.s32.totalorder %v909, 0
        %v911 = vsub.s32 0, %v909
        %v912 = vsel %vm910, %v911, %v909
        %v913 = vclz %v912
        %v914 = vsub.s32 %v913, 2
        %vm915 = vcmp.gt.s32.totalorder 0, %v914
        %v916 = vsel %vm915, 0, %v914
        %v917 = vsub.s32 32, %v916
        %v918 = vshll.u32 %v909, %v916
        %v919 = vshrl.u32 %v901, %v917
        %v920 = vor.u32 %v918, %v919
        %v921 = vsub.s32 4294967266, %v916
        %v922 = vadd.s32 %v921, 127
        %v923 = vshll.u32 %v922, 23
        %v924 = vor.u32 4788187, %v923
        %v925 = vand.u32 2147483647, %v924
        %v927 = vcvt.s32.f32 %v920
        %v928 = vmul.f32 %v927, %v925
        %v929 = vxor.u32 %v928, 2147483648
        %v930 = vsel %vm809, %v929, %v928
        %v931 = vsub.s32 4, %v907
        %v932 = vsel %vm809, %v931, %v907
        %v933 = vsel %vm808, %v483, %v930
        %v934 = vsel %vm808, 0, %v932
        %v935 = vmul.f32 %v933, %v933
        %v936 = vmul.f32 %v935, -0.001358992
        %v937 = vadd.f32 %v936, 0.041655596
        %v938 = vmul.f32 %v935, %v937
        %v939 = vadd.f32 %v938, -0.4999988
        %v940 = vmul.f32 %v935, %v939
        %v941 = vadd.f32 1.0, %v940
        %v942 = vmul.f32 %v933, %v933
        %v943 = vmul.f32 %v942, -0.00019511016
        %v944 = vadd.f32 %v943, 0.008332121
        %v945 = vmul.f32 %v942, %v944
        %v946 = vadd.f32 %v945, -0.16666654
        %v947 = vmul.f32 %v942, %v946
        %v948 = vadd.f32 %v947, 1.0
        %v949 = vmul.f32 %v948, %v933
        %vm950 = vweird.f32 %v483
        %v951 = vadd.s32 %v934, 3
        %v952 = vand.u32 %v951, 3
        %vm953 = vcmp.lt.s32.totalorder %v952, 2
        %vm954 = vcmp.eq.s32.totalorder %v952, 0
        %v955 = vxor.u32 %v949, 2147483648
        %v956 = vsel %vm954, %v941, %v955
        %vm957 = vcmp.eq.s32.totalorder %v952, 2
        %v958 = vxor.u32 %v941, 2147483648
        %v959 = vsel %vm957, %v958, %v949
        %v960 = vsel %vm953, %v956, %v959
        %v961 = vsel %vm950, nan, %v960
        %v962 = vand.u32 2147483647, %v484
        %vm963 = vcmp.le.f32.partialorder %v962, 0.7853982
        %vm964 = vcmp.lt.s32.totalorder %v484, 0
        %v965 = vand.u32 %v484, 2139095040
        %v966 = vshrl.u32 %v965, 23
        %v967 = vsub.s32 %v966, 127
        %v968 = vand.u32 2147483647, %v484
        %v969 = vand.u32 %v968, 8388607
        %v970 = vor.u32 %v969, 8388608
        %v971 = vsub.s32 0, %v970
        %v972 = vadd.s32 %v967, 1
        %vm973 = vcmp.gt.s32.totalorder %v972, 0
        %v974 = vsel %vm973, %v972, 0
        %v975 = vshrl.u32 %v974, 5
        %v976 = vand.u32 %v974, 31
        %v977 = vsub.s32 32, %v976
        %v978 = vshrl.u32 683565275, %v977
        %v979 = vshll.u32 683565275, %v976
        %v980 = vshrl.u32 2475754826, %v977
        %v981 = vor.u32 %v979, %v980
        %v982 = vshll.u32 2475754826, %v976
        %v983 = vshrl.u32 2131351028, %v977
        %v984 = vor.u32 %v982, %v983
        %v985 = vshll.u32 2131351028, %v976
        %v986 = vshrl.u32 2102212464, %v977
        %v987 = vor.u32 %v985, %v986
        %v988 = vshll.u32 2102212464, %v976
        %v989 = vshrl.u32 920167782, %v977
        %v990 = vor.u32 %v988, %v989
        %v991 = vshll.u32 920167782, %v976
        %v992 = vshrl.u32 1326507024, %v977
        %v993 = vor.u32 %v991, %v992
        %vm994 = vcmp.lt.s32.totalorder %v975, 1
        %vm995 = vcmp.lt.s32.totalorder %v975, 2
        %vm996 = vcmp.lt.s32.totalorder %v975, 3
        %vm997 = vcmp.lt.s32.totalorder %v975, 4
        %v998 = vsel %vm994, %v978, %v981
        %v999 = vsel %vm997, %v987, 2102212464
        %v1000 = vsel %vm996, %v984, %v999
        %v1001 = vsel %vm995, %v998, %v1000
        %v1002 = vsel %vm994, %v981, %v984
        %v1003 = vsel %vm997, %v990, 920167782
        %v1004 = vsel %vm996, %v987, %v1003
        %v1005 = vsel %vm995, %v1002, %v1004
        %v1006 = vsel %vm994, %v984, %v987
        %v1007 = vsel %vm997, %v993, 1326507024
        %v1008 = vsel %vm996, %v990, %v1007
        %v1009 = vsel %vm995, %v1006, %v1008
        %v1010 = vshll.u32 %v970, 8
        %v1011 = vand.u32 %v1010, 65535
        %v1012 = vshrl.u32 %v1010, 16
        %v1013 = vand.u32 %v1009, 65535
        %v1014 = vshrl.u32 %v1009, 16
        %v1015 = vmul.u32 %v1011, %v1013
        %v1016 = vmul.u32 %v1011, %v1014
        %v1017 = vmul.u32 %v1012, %v1013
        %v1018 = vmul.u32 %v1012, %v1014
        %v1019 = vshll.u32 %v1016, 16
        %v1020 = vshrl.u32 %v1016, 16
        %v1021 = vshll.u32 %v1017, 16
        %v1022 = vshrl.u32 %v1017, 16
        %vm1023 = vc.u32 %v1015, %v1019
        %v1024 = vsel %vm1023, 1, 0
        %v1025 = vadd.s32 %v1015, %v1019
        %v1026 = vadd.s32 %v1018, %v1024
        %vm1027 = vc.u32 %v1025, %v1021
        %v1028 = vsel %vm1027, 1, 0
        %v1029 = vadd.s32 %v1025, %v1021
        %v1030 = vadd.s32 %v1026, %v1028
        %v1031 = vadd.s32 %v1030, %v1020
        %v1032 = vadd.s32 %v1031, %v1022
        %v1033 = vand.u32 %v1010, 65535
        %v1034 = vshrl.u32 %v1010, 16
        %v1035 = vand.u32 %v1005, 65535
        %v1036 = vshrl.u32 %v1005, 16
        %v1037 = vmul.u32 %v1033, %v1035
        %v1038 = vmul.u32 %v1033, %v1036
        %v1039 = vmul.u32 %v1034, %v1035
        %v1040 = vmul.u32 %v1034, %v1036
        %v1041 = vshll.u32 %v1038, 16
        %v1042 = vshrl.u32 %v1038, 16
        %v1043 = vshll.u32 %v1039, 16
        %v1044 = vshrl.u32 %v1039, 16
        %vm1045 = vc.u32 %v1037, %v1041
        %v1046 = vsel %vm1045, 1, 0
        %v1047 = vadd.s32 %v1037, %v1041
        %v1048 = vadd.s32 %v1040, %v1046
        %vm1049 = vc.u32 %v1047, %v1043
        %v1050 = vsel %vm1049, 1, 0
        %v1051 = vadd.s32 %v1047, %v1043
        %v1052 = vadd.s32 %v1048, %v1050
        %v1053 = vadd.s32 %v1052, %v1042
        %v1054 = vadd.s32 %v1053, %v1044
        %v1055 = vmul.u32 %v1010, %v1001
        %v1056 = vadd.s32 %v1032, %v1051
        %vm1057 = vc.u32 %v1032, %v1051
        %v1058 = vadd.s32 %v1054, 1
        %v1059 = vsel %vm1057, %v1058, %v1054
        %v1060 = vadd.s32 %v1055, %v1059
        %v1061 = vadd.s32 %v1060, 536870912
        %v1062 = vshrl.u32 %v1061, 30
        %v1063 = vshll.u32 %v1062, 30
        %v1064 = vsub.s32 %v1060, %v1063
        %vm1065 = vcmp.lt.s32.totalorder %v1064, 0
        %v1066 = vsub.s32 0, %v1064
        %v1067 = vsel %vm1065, %v1066, %v1064
        %v1068 = vclz %v1067
        %v1069 = vsub.s32 %v1068, 2
        %vm1070 = vcmp.gt.s32.totalorder 0, %v1069
        %v1071 = vsel %vm1070, 0, %v1069
        %v1072 = vsub.s32 32, %v1071
        %v1073 = vshll.u32 %v1064, %v1071
        %v1074 = vshrl.u32 %v1056, %v1072
        %v1075 = vor.u32 %v1073, %v1074
        %v1076 = vsub.s32 4294967266, %v1071
        %v1077 = vadd.s32 %v1076, 127
        %v1078 = vshll.u32 %v1077, 23
        %v1079 = vor.u32 4788187, %v1078
        %v1080 = vand.u32 2147483647, %v1079
        %v1082 = vcvt.s32.f32 %v1075
        %v1083 = vmul.f32 %v1082, %v1080
        %v1084 = vxor.u32 %v1083, 2147483648
        %v1085 = vsel %vm964, %v1084, %v1083
        %v1086 = vsub.s32 4, %v1062
        %v1087 = vsel %vm964, %v1086, %v1062
        %v1088 = vsel %vm963, %v484, %v1085
        %v1089 = vsel %vm963, 0, %v1087
        %v1090 = vmul.f32 %v1088, %v1088
        %v1091 = vmul.f32 %v1090, -0.001358992
        %v1092 = vadd.f32 %v1091, 0.041655596
        %v1093 = vmul.f32 %v1090, %v1092
        %v1094 = vadd.f32 %v1093, -0.4999988
        %v1095 = vmul.f32 %v1090, %v1094
        %v1096 = vadd.f32 1.0, %v1095
        %v1097 = vmul.f32 %v1088, %v1088
        %v1098 = vmul.f32 %v1097, -0.00019511016
        %v1099 = vadd.f32 %v1098, 0.008332121
        %v1100 = vmul.f32 %v1097, %v1099
        %v1101 = vadd.f32 %v1100, -0.16666654
        %v1102 = vmul.f32 %v1097, %v1101
        %v1103 = vadd.f32 %v1102, 1.0
        %v1104 = vmul.f32 %v1103, %v1088
        %vm1105 = vweird.f32 %v484
        %v1106 = vadd.s32 %v1089, 3
        %v1107 = vand.u32 %v1106, 3
        %vm1108 = vcmp.lt.s32.totalorder %v1107, 2
        %vm1109 = vcmp.eq.s32.totalorder %v1107, 0
        %v1110 = vxor.u32 %v1104, 2147483648
        %v1111 = vsel %vm1109, %v1096, %v1110
        %vm1112 = vcmp.eq.s32.totalorder %v1107, 2
        %v1113 = vxor.u32 %v1096, 2147483648
        %v1114 = vsel %vm1112, %v1113, %v1104
        %v1115 = vsel %vm1108, %v1111, %v1114
        %v1116 = vsel %vm1105, nan, %v1115
        %v1117 = vand.u32 2147483647, %v485
        %vm1118 = vcmp.le.f32.partialorder %v1117, 0.7853982
        %vm1119 = vcmp.lt.s32.totalorder %v485, 0
        %v1120 = vand.u32 %v485, 2139095040
        %v1121 = vshrl.u32 %v1120, 23
        %v1122 = vsub.s32 %v1121, 127
        %v1123 = vand.u32 2147483647, %v485
        %v1124 = vand.u32 %v1123, 8388607
        %v1125 = vor.u32 %v1124, 8388608
        %v1126 = vsub.s32 0, %v1125
        %v1127 = vadd.s32 %v1122, 1
        %vm1128 = vcmp.gt.s32.totalorder %v1127, 0
        %v1129 = vsel %vm1128, %v1127, 0
        %v1130 = vshrl.u32 %v1129, 5
        %v1131 = vand.u32 %v1129, 31
        %v1132 = vsub.s32 32, %v1131
        %v1133 = vshrl.u32 683565275, %v1132
        %v1134 = vshll.u32 683565275, %v1131
        %v1135 = vshrl.u32 2475754826, %v1132
        %v1136 = vor.u32 %v1134, %v1135
        %v1137 = vshll.u32 2475754826, %v1131
        %v1138 = vshrl.u32 2131351028, %v1132
        %v1139 = vor.u32 %v1137, %v1138
        %v1140 = vshll.u32 2131351028, %v1131
        %v1141 = vshrl.u32 2102212464, %v1132
        %v1142 = vor.u32 %v1140, %v1141
        %v1143 = vshll.u32 2102212464, %v1131
        %v1144 = vshrl.u32 920167782, %v1132
        %v1145 = vor.u32 %v1143, %v1144
        %v1146 = vshll.u32 920167782, %v1131
        %v1147 = vshrl.u32 1326507024, %v1132
        %v1148 = vor.u32 %v1146, %v1147
        %vm1149 = vcmp.lt.s32.totalorder %v1130, 1
        %vm1150 = vcmp.lt.s32.totalorder %v1130, 2
        %vm1151 = vcmp.lt.s32.totalorder %v1130, 3
        %vm1152 = vcmp.lt.s32.totalorder %v1130, 4
        %v1153 = vsel %vm1149, %v1133, %v1136
        %v1154 = vsel %vm1152, %v1142, 2102212464
        %v1155 = vsel %vm1151, %v1139, %v1154
        %v1156 = vsel %vm1150, %v1153, %v1155
        %v1157 = vsel %vm1149, %v1136, %v1139
        %v1158 = vsel %vm1152, %v1145, 920167782
        %v1159 = vsel %vm1151, %v1142, %v1158
        %v1160 = vsel %vm1150, %v1157, %v1159
        %v1161 = vsel %vm1149, %v1139, %v1142
        %v1162 = vsel %vm1152, %v1148, 1326507024
        %v1163 = vsel %vm1151, %v1145, %v1162
        %v1164 = vsel %vm1150, %v1161, %v1163
        %v1165 = vshll.u32 %v1125, 8
        %v1166 = vand.u32 %v1165, 65535
        %v1167 = vshrl.u32 %v1165, 16
        %v1168 = vand.u32 %v1164, 65535
        %v1169 = vshrl.u32 %v1164, 16
        %v1170 = vmul.u32 %v1166, %v1168
        %v1171 = vmul.u32 %v1166, %v1169
        %v1172 = vmul.u32 %v1167, %v1168
        %v1173 = vmul.u32 %v1167, %v1169
        %v1174 = vshll.u32 %v1171, 16
        %v1175 = vshrl.u32 %v1171, 16
        %v1176 = vshll.u32 %v1172, 16
        %v1177 = vshrl.u32 %v1172, 16
        %vm1178 = vc.u32 %v1170, %v1174
        %v1179 = vsel %vm1178, 1, 0
        %v1180 = vadd.s32 %v1170, %v1174
        %v1181 = vadd.s32 %v1173, %v1179
        %vm1182 = vc.u32 %v1180, %v1176
        %v1183 = vsel %vm1182, 1, 0
        %v1184 = vadd.s32 %v1180, %v1176
        %v1185 = vadd.s32 %v1181, %v1183
        %v1186 = vadd.s32 %v1185, %v1175
        %v1187 = vadd.s32 %v1186, %v1177
        %v1188 = vand.u32 %v1165, 65535
        %v1189 = vshrl.u32 %v1165, 16
        %v1190 = vand.u32 %v1160, 65535
        %v1191 = vshrl.u32 %v1160, 16
        %v1192 = vmul.u32 %v1188, %v1190
        %v1193 = vmul.u32 %v1188, %v1191
        %v1194 = vmul.u32 %v1189, %v1190
        %v1195 = vmul.u32 %v1189, %v1191
        %v1196 = vshll.u32 %v1193, 16
        %v1197 = vshrl.u32 %v1193, 16
        %v1198 = vshll.u32 %v1194, 16
        %v1199 = vshrl.u32 %v1194, 16
        %vm1200 = vc.u32 %v1192, %v1196
        %v1201 = vsel %vm1200, 1, 0
        %v1202 = vadd.s32 %v1192, %v1196
        %v1203 = vadd.s32 %v1195, %v1201
        %vm1204 = vc.u32 %v1202, %v1198
        %v1205 = vsel %vm1204, 1, 0
        %v1206 = vadd.s32 %v1202, %v1198
        %v1207 = vadd.s32 %v1203, %v1205
        %v1208 = vadd.s32 %v1207, %v1197
        %v1209 = vadd.s32 %v1208, %v1199
        %v1210 = vmul.u32 %v1165, %v1156
        %v1211 = vadd.s32 %v1187, %v1206
        %vm1212 = vc.u32 %v1187, %v1206
        %v1213 = vadd.s32 %v1209, 1
        %v1214 = vsel %vm1212, %v1213, %v1209
        %v1215 = vadd.s32 %v1210, %v1214
        %v1216 = vadd.s32 %v1215, 536870912
        %v1217 = vshrl.u32 %v1216, 30
        %v1218 = vshll.u32 %v1217, 30
        %v1219 = vsub.s32 %v1215, %v1218
        %vm1220 = vcmp.lt.s32.totalorder %v1219, 0
        %v1221 = vsub.s32 0, %v1219
        %v1222 = vsel %vm1220, %v1221, %v1219
        %v1223 = vclz %v1222
        %v1224 = vsub.s32 %v1223, 2
        %vm1225 = vcmp.gt.s32.totalorder 0, %v1224
        %v1226 = vsel %vm1225, 0, %v1224
        %v1227 = vsub.s32 32, %v1226
        %v1228 = vshll.u32 %v1219, %v1226
        %v1229 = vshrl.u32 %v1211, %v1227
        %v1230 = vor.u32 %v1228, %v1229
        %v1231 = vsub.s32 4294967266, %v1226
        %v1232 = vadd.s32 %v1231, 127
        %v1233 = vshll.u32 %v1232, 23
        %v1234 = vor.u32 4788187, %v1233
        %v1235 = vand.u32 2147483647, %v1234
        %v1237 = vcvt.s32.f32 %v1230
        %v1238 = vmul.f32 %v1237, %v1235
        %v1239 = vxor.u32 %v1238, 2147483648
        %v1240 = vsel %vm1119, %v1239, %v1238
        %v1241 = vsub.s32 4, %v1217
        %v1242 = vsel %vm1119, %v1241, %v1217
        %v1243 = vsel %vm1118, %v485, %v1240
        %v1244 = vsel %vm1118, 0, %v1242
        %v1245 = vmul.f32 %v1243, %v1243
        %v1246 = vmul.f32 %v1245, -0.001358992
        %v1247 = vadd.f32 %v1246, 0.041655596
        %v1248 = vmul.f32 %v1245, %v1247
        %v1249 = vadd.f32 %v1248, -0.4999988
        %v1250 = vmul.f32 %v1245, %v1249
        %v1251 = vadd.f32 1.0, %v1250
        %v1252 = vmul.f32 %v1243, %v1243
        %v1253 = vmul.f32 %v1252, -0.00019511016
        %v1254 = vadd.f32 %v1253, 0.008332121
        %v1255 = vmul.f32 %v1252, %v1254
        %v1256 = vadd.f32 %v1255, -0.16666654
        %v1257 = vmul.f32 %v1252, %v1256
        %v1258 = vadd.f32 %v1257, 1.0
        %v1259 = vmul.f32 %v1258, %v1243
        %vm1260 = vweird.f32 %v485
        %v1261 = vadd.s32 %v1244, 3
        %v1262 = vand.u32 %v1261, 3
        %vm1263 = vcmp.lt.s32.totalorder %v1262, 2
        %vm1264 = vcmp.eq.s32.totalorder %v1262, 0
        %v1265 = vxor.u32 %v1259, 2147483648
        %v1266 = vsel %vm1264, %v1251, %v1265
        %vm1267 = vcmp.eq.s32.totalorder %v1262, 2
        %v1268 = vxor.u32 %v1251, 2147483648
        %v1269 = vsel %vm1267, %v1268, %v1259
        %v1270 = vsel %vm1263, %v1266, %v1269
        %v1271 = vsel %vm1260, nan, %v1270
        %v1272 = vand.u32 2147483647, %v486
        %vm1273 = vcmp.le.f32.partialorder %v1272, 0.7853982
        %vm1274 = vcmp.lt.s32.totalorder %v486, 0
        %v1275 = vand.u32 %v486, 2139095040
        %v1276 = vshrl.u32 %v1275, 23
        %v1277 = vsub.s32 %v1276, 127
        %v1278 = vand.u32 2147483647, %v486
        %v1279 = vand.u32 %v1278, 8388607
        %v1280 = vor.u32 %v1279, 8388608
        %v1281 = vsub.s32 0, %v1280
        %v1282 = vadd.s32 %v1277, 1
        %vm1283 = vcmp.gt.s32.totalorder %v1282, 0
        %v1284 = vsel %vm1283, %v1282, 0
        %v1285 = vshrl.u32 %v1284, 5
        %v1286 = vand.u32 %v1284, 31
        %v1287 = vsub.s32 32, %v1286
        %v1288 = vshrl.u32 683565275, %v1287
        %v1289 = vshll.u32 683565275, %v1286
        %v1290 = vshrl.u32 2475754826, %v1287
        %v1291 = vor.u32 %v1289, %v1290
        %v1292 = vshll.u32 2475754826, %v1286
        %v1293 = vshrl.u32 2131351028, %v1287
        %v1294 = vor.u32 %v1292, %v1293
        %v1295 = vshll.u32 2131351028, %v1286
        %v1296 = vshrl.u32 2102212464, %v1287
        %v1297 = vor.u32 %v1295, %v1296
        %v1298 = vshll.u32 2102212464, %v1286
        %v1299 = vshrl.u32 920167782, %v1287
        %v1300 = vor.u32 %v1298, %v1299
        %v1301 = vshll.u32 920167782, %v1286
        %v1302 = vshrl.u32 1326507024, %v1287
        %v1303 = vor.u32 %v1301, %v1302
        %vm1304 = vcmp.lt.s32.totalorder %v1285, 1
        %vm1305 = vcmp.lt.s32.totalorder %v1285, 2
        %vm1306 = vcmp.lt.s32.totalorder %v1285, 3
        %vm1307 = vcmp.lt.s32.totalorder %v1285, 4
        %v1308 = vsel %vm1304, %v1288, %v1291
        %v1309 = vsel %vm1307, %v1297, 2102212464
        %v1310 = vsel %vm1306, %v1294, %v1309
        %v1311 = vsel %vm1305, %v1308, %v1310
        %v1312 = vsel %vm1304, %v1291, %v1294
        %v1313 = vsel %vm1307, %v1300, 920167782
        %v1314 = vsel %vm1306, %v1297, %v1313
        %v1315 = vsel %vm1305, %v1312, %v1314
        %v1316 = vsel %vm1304, %v1294, %v1297
        %v1317 = vsel %vm1307, %v1303, 1326507024
        %v1318 = vsel %vm1306, %v1300, %v1317
        %v1319 = vsel %vm1305, %v1316, %v1318
        %v1320 = vshll.u32 %v1280, 8
        %v1321 = vand.u32 %v1320, 65535
        %v1322 = vshrl.u32 %v1320, 16
        %v1323 = vand.u32 %v1319, 65535
        %v1324 = vshrl.u32 %v1319, 16
        %v1325 = vmul.u32 %v1321, %v1323
        %v1326 = vmul.u32 %v1321, %v1324
        %v1327 = vmul.u32 %v1322, %v1323
        %v1328 = vmul.u32 %v1322, %v1324
        %v1329 = vshll.u32 %v1326, 16
        %v1330 = vshrl.u32 %v1326, 16
        %v1331 = vshll.u32 %v1327, 16
        %v1332 = vshrl.u32 %v1327, 16
        %vm1333 = vc.u32 %v1325, %v1329
        %v1334 = vsel %vm1333, 1, 0
        %v1335 = vadd.s32 %v1325, %v1329
        %v1336 = vadd.s32 %v1328, %v1334
        %vm1337 = vc.u32 %v1335, %v1331
        %v1338 = vsel %vm1337, 1, 0
        %v1339 = vadd.s32 %v1335, %v1331
        %v1340 = vadd.s32 %v1336, %v1338
        %v1341 = vadd.s32 %v1340, %v1330
        %v1342 = vadd.s32 %v1341, %v1332
        %v1343 = vand.u32 %v1320, 65535
        %v1344 = vshrl.u32 %v1320, 16
        %v1345 = vand.u32 %v1315, 65535
        %v1346 = vshrl.u32 %v1315, 16
        %v1347 = vmul.u32 %v1343, %v1345
        %v1348 = vmul.u32 %v1343, %v1346
        %v1349 = vmul.u32 %v1344, %v1345
        %v1350 = vmul.u32 %v1344, %v1346
        %v1351 = vshll.u32 %v1348, 16
        %v1352 = vshrl.u32 %v1348, 16
        %v1353 = vshll.u32 %v1349, 16
        %v1354 = vshrl.u32 %v1349, 16
        %vm1355 = vc.u32 %v1347, %v1351
        %v1356 = vsel %vm1355, 1, 0
        %v1357 = vadd.s32 %v1347, %v1351
        %v1358 = vadd.s32 %v1350, %v1356
        %vm1359 = vc.u32 %v1357, %v1353
        %v1360 = vsel %vm1359, 1, 0
        %v1361 = vadd.s32 %v1357, %v1353
        %v1362 = vadd.s32 %v1358, %v1360
        %v1363 = vadd.s32 %v1362, %v1352
        %v1364 = vadd.s32 %v1363, %v1354
        %v1365 = vmul.u32 %v1320, %v1311
        %v1366 = vadd.s32 %v1342, %v1361
        %vm1367 = vc.u32 %v1342, %v1361
        %v1368 = vadd.s32 %v1364, 1
        %v1369 = vsel %vm1367, %v1368, %v1364
        %v1370 = vadd.s32 %v1365, %v1369
        %v1371 = vadd.s32 %v1370, 536870912
        %v1372 = vshrl.u32 %v1371, 30
        %v1373 = vshll.u32 %v1372, 30
        %v1374 = vsub.s32 %v1370, %v1373
        %vm1375 = vcmp.lt.s32.totalorder %v1374, 0
        %v1376 = vsub.s32 0, %v1374
        %v1377 = vsel %vm1375, %v1376, %v1374
        %v1378 = vclz %v1377
        %v1379 = vsub.s32 %v1378, 2
        %vm1380 = vcmp.gt.s32.totalorder 0, %v1379
        %v1381 = vsel %vm1380, 0, %v1379
        %v1382 = vsub.s32 32, %v1381
        %v1383 = vshll.u32 %v1374, %v1381
        %v1384 = vshrl.u32 %v1366, %v1382
        %v1385 = vor.u32 %v1383, %v1384
        %v1386 = vsub.s32 4294967266, %v1381
        %v1387 = vadd.s32 %v1386, 127
        %v1388 = vshll.u32 %v1387, 23
        %v1389 = vor.u32 4788187, %v1388
        %v1390 = vand.u32 2147483647, %v1389
        %v1392 = vcvt.s32.f32 %v1385
        %v1393 = vmul.f32 %v1392, %v1390
        %v1394 = vxor.u32 %v1393, 2147483648
        %v1395 = vsel %vm1274, %v1394, %v1393
        %v1396 = vsub.s32 4, %v1372
        %v1397 = vsel %vm1274, %v1396, %v1372
        %v1398 = vsel %vm1273, %v486, %v1395
        %v1399 = vsel %vm1273, 0, %v1397
        %v1400 = vmul.f32 %v1398, %v1398
        %v1401 = vmul.f32 %v1400, -0.001358992
        %v1402 = vadd.f32 %v1401, 0.041655596
        %v1403 = vmul.f32 %v1400, %v1402
        %v1404 = vadd.f32 %v1403, -0.4999988
        %v1405 = vmul.f32 %v1400, %v1404
        %v1406 = vadd.f32 1.0, %v1405
        %v1407 = vmul.f32 %v1398, %v1398
        %v1408 = vmul.f32 %v1407, -0.00019511016
        %v1409 = vadd.f32 %v1408, 0.008332121
        %v1410 = vmul.f32 %v1407, %v1409
        %v1411 = vadd.f32 %v1410, -0.16666654
        %v1412 = vmul.f32 %v1407, %v1411
        %v1413 = vadd.f32 %v1412, 1.0
        %v1414 = vmul.f32 %v1413, %v1398
        %vm1415 = vweird.f32 %v486
        %v1416 = vadd.s32 %v1399, 3
        %v1417 = vand.u32 %v1416, 3
        %vm1418 = vcmp.lt.s32.totalorder %v1417, 2
        %vm1419 = vcmp.eq.s32.totalorder %v1417, 0
        %v1420 = vxor.u32 %v1414, 2147483648
        %v1421 = vsel %vm1419, %v1406, %v1420
        %vm1422 = vcmp.eq.s32.totalorder %v1417, 2
        %v1423 = vxor.u32 %v1406, 2147483648
        %v1424 = vsel %vm1422, %v1423, %v1414
        %v1425 = vsel %vm1418, %v1421, %v1424
        %v1426 = vsel %vm1415, nan, %v1425
        %v1427 = vand.u32 2147483647, %v487
        %vm1428 = vcmp.le.f32.partialorder %v1427, 0.7853982
        %vm1429 = vcmp.lt.s32.totalorder %v487, 0
        %v1430 = vand.u32 %v487, 2139095040
        %v1431 = vshrl.u32 %v1430, 23
        %v1432 = vsub.s32 %v1431, 127
        %v1433 = vand.u32 2147483647, %v487
        %v1434 = vand.u32 %v1433, 8388607
        %v1435 = vor.u32 %v1434, 8388608
        %v1436 = vsub.s32 0, %v1435
        %v1437 = vadd.s32 %v1432, 1
        %vm1438 = vcmp.gt.s32.totalorder %v1437, 0
        %v1439 = vsel %vm1438, %v1437, 0
        %v1440 = vshrl.u32 %v1439, 5
        %v1441 = vand.u32 %v1439, 31
        %v1442 = vsub.s32 32, %v1441
        %v1443 = vshrl.u32 683565275, %v1442
        %v1444 = vshll.u32 683565275, %v1441
        %v1445 = vshrl.u32 2475754826, %v1442
        %v1446 = vor.u32 %v1444, %v1445
        %v1447 = vshll.u32 2475754826, %v1441
        %v1448 = vshrl.u32 2131351028, %v1442
        %v1449 = vor.u32 %v1447, %v1448
        %v1450 = vshll.u32 2131351028, %v1441
        %v1451 = vshrl.u32 2102212464, %v1442
        %v1452 = vor.u32 %v1450, %v1451
        %v1453 = vshll.u32 2102212464, %v1441
        %v1454 = vshrl.u32 920167782, %v1442
        %v1455 = vor.u32 %v1453, %v1454
        %v1456 = vshll.u32 920167782, %v1441
        %v1457 = vshrl.u32 1326507024, %v1442
        %v1458 = vor.u32 %v1456, %v1457
        %vm1459 = vcmp.lt.s32.totalorder %v1440, 1
        %vm1460 = vcmp.lt.s32.totalorder %v1440, 2
        %vm1461 = vcmp.lt.s32.totalorder %v1440, 3
        %vm1462 = vcmp.lt.s32.totalorder %v1440, 4
        %v1463 = vsel %vm1459, %v1443, %v1446
        %v1464 = vsel %vm1462, %v1452, 2102212464
        %v1465 = vsel %vm1461, %v1449, %v1464
        %v1466 = vsel %vm1460, %v1463, %v1465
        %v1467 = vsel %vm1459, %v1446, %v1449
        %v1468 = vsel %vm1462, %v1455, 920167782
        %v1469 = vsel %vm1461, %v1452, %v1468
        %v1470 = vsel %vm1460, %v1467, %v1469
        %v1471 = vsel %vm1459, %v1449, %v1452
        %v1472 = vsel %vm1462, %v1458, 1326507024
        %v1473 = vsel %vm1461, %v1455, %v1472
        %v1474 = vsel %vm1460, %v1471, %v1473
        %v1475 = vshll.u32 %v1435, 8
        %v1476 = vand.u32 %v1475, 65535
        %v1477 = vshrl.u32 %v1475, 16
        %v1478 = vand.u32 %v1474, 65535
        %v1479 = vshrl.u32 %v1474, 16
        %v1480 = vmul.u32 %v1476, %v1478
        %v1481 = vmul.u32 %v1476, %v1479
        %v1482 = vmul.u32 %v1477, %v1478
        %v1483 = vmul.u32 %v1477, %v1479
        %v1484 = vshll.u32 %v1481, 16
        %v1485 = vshrl.u32 %v1481, 16
        %v1486 = vshll.u32 %v1482, 16
        %v1487 = vshrl.u32 %v1482, 16
        %vm1488 = vc.u32 %v1480, %v1484
        %v1489 = vsel %vm1488, 1, 0
        %v1490 = vadd.s32 %v1480, %v1484
        %v1491 = vadd.s32 %v1483, %v1489
        %vm1492 = vc.u32 %v1490, %v1486
        %v1493 = vsel %vm1492, 1, 0
        %v1494 = vadd.s32 %v1490, %v1486
        %v1495 = vadd.s32 %v1491, %v1493
        %v1496 = vadd.s32 %v1495, %v1485
        %v1497 = vadd.s32 %v1496, %v1487
        %v1498 = vand.u32 %v1475, 65535
        %v1499 = vshrl.u32 %v1475, 16
        %v1500 = vand.u32 %v1470, 65535
        %v1501 = vshrl.u32 %v1470, 16
        %v1502 = vmul.u32 %v1498, %v1500
        %v1503 = vmul.u32 %v1498, %v1501
        %v1504 = vmul.u32 %v1499, %v1500
        %v1505 = vmul.u32 %v1499, %v1501
        %v1506 = vshll.u32 %v1503, 16
        %v1507 = vshrl.u32 %v1503, 16
        %v1508 = vshll.u32 %v1504, 16
        %v1509 = vshrl.u32 %v1504, 16
        %vm1510 = vc.u32 %v1502, %v1506
        %v1511 = vsel %vm1510, 1, 0
        %v1512 = vadd.s32 %v1502, %v1506
        %v1513 = vadd.s32 %v1505, %v1511
        %vm1514 = vc.u32 %v1512, %v1508
        %v1515 = vsel %vm1514, 1, 0
        %v1516 = vadd.s32 %v1512, %v1508
        %v1517 = vadd.s32 %v1513, %v1515
        %v1518 = vadd.s32 %v1517, %v1507
        %v1519 = vadd.s32 %v1518, %v1509
        %v1520 = vmul.u32 %v1475, %v1466
        %v1521 = vadd.s32 %v1497, %v1516
        %vm1522 = vc.u32 %v1497, %v1516
        %v1523 = vadd.s32 %v1519, 1
        %v1524 = vsel %vm1522, %v1523, %v1519
        %v1525 = vadd.s32 %v1520, %v1524
        %v1526 = vadd.s32 %v1525, 536870912
        %v1527 = vshrl.u32 %v1526, 30
        %v1528 = vshll.u32 %v1527, 30
        %v1529 = vsub.s32 %v1525, %v1528
        %vm1530 = vcmp.lt.s32.totalorder %v1529, 0
        %v1531 = vsub.s32 0, %v1529
        %v1532 = vsel %vm1530, %v1531, %v1529
        %v1533 = vclz %v1532
        %v1534 = vsub.s32 %v1533, 2
        %vm1535 = vcmp.gt.s32.totalorder 0, %v1534
        %v1536 = vsel %vm1535, 0, %v1534
        %v1537 = vsub.s32 32, %v1536
        %v1538 = vshll.u32 %v1529, %v1536
        %v1539 = vshrl.u32 %v1521, %v1537
        %v1540 = vor.u32 %v1538, %v1539
        %v1541 = vsub.s32 4294967266, %v1536
        %v1542 = vadd.s32 %v1541, 127
        %v1543 = vshll.u32 %v1542, 23
        %v1544 = vor.u32 4788187, %v1543
        %v1545 = vand.u32 2147483647, %v1544
        %v1547 = vcvt.s32.f32 %v1540
        %v1548 = vmul.f32 %v1547, %v1545
        %v1549 = vxor.u32 %v1548, 2147483648
        %v1550 = vsel %vm1429, %v1549, %v1548
        %v1551 = vsub.s32 4, %v1527
        %v1552 = vsel %vm1429, %v1551, %v1527
        %v1553 = vsel %vm1428, %v487, %v1550
        %v1554 = vsel %vm1428, 0, %v1552
        %v1555 = vmul.f32 %v1553, %v1553
        %v1556 = vmul.f32 %v1555, -0.001358992
        %v1557 = vadd.f32 %v1556, 0.041655596
        %v1558 = vmul.f32 %v1555, %v1557
        %v1559 = vadd.f32 %v1558, -0.4999988
        %v1560 = vmul.f32 %v1555, %v1559
        %v1561 = vadd.f32 1.0, %v1560
        %v1562 = vmul.f32 %v1553, %v1553
        %v1563 = vmul.f32 %v1562, -0.00019511016
        %v1564 = vadd.f32 %v1563, 0.008332121
        %v1565 = vmul.f32 %v1562, %v1564
        %v1566 = vadd.f32 %v1565, -0.16666654
        %v1567 = vmul.f32 %v1562, %v1566
        %v1568 = vadd.f32 %v1567, 1.0
        %v1569 = vmul.f32 %v1568, %v1553
        %vm1570 = vweird.f32 %v487
        %v1571 = vadd.s32 %v1554, 3
        %v1572 = vand.u32 %v1571, 3
        %vm1573 = vcmp.lt.s32.totalorder %v1572, 2
        %vm1574 = vcmp.eq.s32.totalorder %v1572, 0
        %v1575 = vxor.u32 %v1569, 2147483648
        %v1576 = vsel %vm1574, %v1561, %v1575
        %vm1577 = vcmp.eq.s32.totalorder %v1572, 2
        %v1578 = vxor.u32 %v1561, 2147483648
        %v1579 = vsel %vm1577, %v1578, %v1569
        %v1580 = vsel %vm1573, %v1576, %v1579
        %v1581 = vsel %vm1570, nan, %v1580
        %v1582 = vand.u32 2147483647, %v488
        %vm1583 = vcmp.le.f32.partialorder %v1582, 0.7853982
        %vm1584 = vcmp.lt.s32.totalorder %v488, 0
        %v1585 = vand.u32 %v488, 2139095040
        %v1586 = vshrl.u32 %v1585, 23
        %v1587 = vsub.s32 %v1586, 127
        %v1588 = vand.u32 2147483647, %v488
        %v1589 = vand.u32 %v1588, 8388607
        %v1590 = vor.u32 %v1589, 8388608
        %v1591 = vsub.s32 0, %v1590
        %v1592 = vadd.s32 %v1587, 1
        %vm1593 = vcmp.gt.s32.totalorder %v1592, 0
        %v1594 = vsel %vm1593, %v1592, 0
        %v1595 = vshrl.u32 %v1594, 5
        %v1596 = vand.u32 %v1594, 31
        %v1597 = vsub.s32 32, %v1596
        %v1598 = vshrl.u32 683565275, %v1597
        %v1599 = vshll.u32 683565275, %v1596
        %v1600 = vshrl.u32 2475754826, %v1597
        %v1601 = vor.u32 %v1599, %v1600
        %v1602 = vshll.u32 2475754826, %v1596
        %v1603 = vshrl.u32 2131351028, %v1597
        %v1604 = vor.u32 %v1602, %v1603
        %v1605 = vshll.u32 2131351028, %v1596
        %v1606 = vshrl.u32 2102212464, %v1597
        %v1607 = vor.u32 %v1605, %v1606
        %v1608 = vshll.u32 2102212464, %v1596
        %v1609 = vshrl.u32 920167782, %v1597
        %v1610 = vor.u32 %v1608, %v1609
        %v1611 = vshll.u32 920167782, %v1596
        %v1612 = vshrl.u32 1326507024, %v1597
        %v1613 = vor.u32 %v1611, %v1612
        %vm1614 = vcmp.lt.s32.totalorder %v1595, 1
        %vm1615 = vcmp.lt.s32.totalorder %v1595, 2
        %vm1616 = vcmp.lt.s32.totalorder %v1595, 3
        %vm1617 = vcmp.lt.s32.totalorder %v1595, 4
        %v1618 = vsel %vm1614, %v1598, %v1601
        %v1619 = vsel %vm1617, %v1607, 2102212464
        %v1620 = vsel %vm1616, %v1604, %v1619
        %v1621 = vsel %vm1615, %v1618, %v1620
        %v1622 = vsel %vm1614, %v1601, %v1604
        %v1623 = vsel %vm1617, %v1610, 920167782
        %v1624 = vsel %vm1616, %v1607, %v1623
        %v1625 = vsel %vm1615, %v1622, %v1624
        %v1626 = vsel %vm1614, %v1604, %v1607
        %v1627 = vsel %vm1617, %v1613, 1326507024
        %v1628 = vsel %vm1616, %v1610, %v1627
        %v1629 = vsel %vm1615, %v1626, %v1628
        %v1630 = vshll.u32 %v1590, 8
        %v1631 = vand.u32 %v1630, 65535
        %v1632 = vshrl.u32 %v1630, 16
        %v1633 = vand.u32 %v1629, 65535
        %v1634 = vshrl.u32 %v1629, 16
        %v1635 = vmul.u32 %v1631, %v1633
        %v1636 = vmul.u32 %v1631, %v1634
        %v1637 = vmul.u32 %v1632, %v1633
        %v1638 = vmul.u32 %v1632, %v1634
        %v1639 = vshll.u32 %v1636, 16
        %v1640 = vshrl.u32 %v1636, 16
        %v1641 = vshll.u32 %v1637, 16
        %v1642 = vshrl.u32 %v1637, 16
        %vm1643 = vc.u32 %v1635, %v1639
        %v1644 = vsel %vm1643, 1, 0
        %v1645 = vadd.s32 %v1635, %v1639
        %v1646 = vadd.s32 %v1638, %v1644
        %vm1647 = vc.u32 %v1645, %v1641
        %v1648 = vsel %vm1647, 1, 0
        %v1649 = vadd.s32 %v1645, %v1641
        %v1650 = vadd.s32 %v1646, %v1648
        %v1651 = vadd.s32 %v1650, %v1640
        %v1652 = vadd.s32 %v1651, %v1642
        %v1653 = vand.u32 %v1630, 65535
        %v1654 = vshrl.u32 %v1630, 16
        %v1655 = vand.u32 %v1625, 65535
        %v1656 = vshrl.u32 %v1625, 16
        %v1657 = vmul.u32 %v1653, %v1655
        %v1658 = vmul.u32 %v1653, %v1656
        %v1659 = vmul.u32 %v1654, %v1655
        %v1660 = vmul.u32 %v1654, %v1656
        %v1661 = vshll.u32 %v1658, 16
        %v1662 = vshrl.u32 %v1658, 16
        %v1663 = vshll.u32 %v1659, 16
        %v1664 = vshrl.u32 %v1659, 16
        %vm1665 = vc.u32 %v1657, %v1661
        %v1666 = vsel %vm1665, 1, 0
        %v1667 = vadd.s32 %v1657, %v1661
        %v1668 = vadd.s32 %v1660, %v1666
        %vm1669 = vc.u32 %v1667, %v1663
        %v1670 = vsel %vm1669, 1, 0
        %v1671 = vadd.s32 %v1667, %v1663
        %v1672 = vadd.s32 %v1668, %v1670
        %v1673 = vadd.s32 %v1672, %v1662
        %v1674 = vadd.s32 %v1673, %v1664
        %v1675 = vmul.u32 %v1630, %v1621
        %v1676 = vadd.s32 %v1652, %v1671
        %vm1677 = vc.u32 %v1652, %v1671
        %v1678 = vadd.s32 %v1674, 1
        %v1679 = vsel %vm1677, %v1678, %v1674
        %v1680 = vadd.s32 %v1675, %v1679
        %v1681 = vadd.s32 %v1680, 536870912
        %v1682 = vshrl.u32 %v1681, 30
        %v1683 = vshll.u32 %v1682, 30
        %v1684 = vsub.s32 %v1680, %v1683
        %vm1685 = vcmp.lt.s32.totalorder %v1684, 0
        %v1686 = vsub.s32 0, %v1684
        %v1687 = vsel %vm1685, %v1686, %v1684
        %v1688 = vclz %v1687
        %v1689 = vsub.s32 %v1688, 2
        %vm1690 = vcmp.gt.s32.totalorder 0, %v1689
        %v1691 = vsel %vm1690, 0, %v1689
        %v1692 = vsub.s32 32, %v1691
        %v1693 = vshll.u32 %v1684, %v1691
        %v1694 = vshrl.u32 %v1676, %v1692
        %v1695 = vor.u32 %v1693, %v1694
        %v1696 = vsub.s32 4294967266, %v1691
        %v1697 = vadd.s32 %v1696, 127
        %v1698 = vshll.u32 %v1697, 23
        %v1699 = vor.u32 4788187, %v1698
        %v1700 = vand.u32 2147483647, %v1699
        %v1702 = vcvt.s32.f32 %v1695
        %v1703 = vmul.f32 %v1702, %v1700
        %v1704 = vxor.u32 %v1703, 2147483648
        %v1705 = vsel %vm1584, %v1704, %v1703
        %v1706 = vsub.s32 4, %v1682
        %v1707 = vsel %vm1584, %v1706, %v1682
        %v1708 = vsel %vm1583, %v488, %v1705
        %v1709 = vsel %vm1583, 0, %v1707
        %v1710 = vmul.f32 %v1708, %v1708
        %v1711 = vmul.f32 %v1710, -0.001358992
        %v1712 = vadd.f32 %v1711, 0.041655596
        %v1713 = vmul.f32 %v1710, %v1712
        %v1714 = vadd.f32 %v1713, -0.4999988
        %v1715 = vmul.f32 %v1710, %v1714
        %v1716 = vadd.f32 1.0, %v1715
        %v1717 = vmul.f32 %v1708, %v1708
        %v1718 = vmul.f32 %v1717, -0.00019511016
        %v1719 = vadd.f32 %v1718, 0.008332121
        %v1720 = vmul.f32 %v1717, %v1719
        %v1721 = vadd.f32 %v1720, -0.16666654
        %v1722 = vmul.f32 %v1717, %v1721
        %v1723 = vadd.f32 %v1722, 1.0
        %v1724 = vmul.f32 %v1723, %v1708
        %vm1725 = vweird.f32 %v488
        %v1726 = vadd.s32 %v1709, 3
        %v1727 = vand.u32 %v1726, 3
        %vm1728 = vcmp.lt.s32.totalorder %v1727, 2
        %vm1729 = vcmp.eq.s32.totalorder %v1727, 0
        %v1730 = vxor.u32 %v1724, 2147483648
        %v1731 = vsel %vm1729, %v1716, %v1730
        %vm1732 = vcmp.eq.s32.totalorder %v1727, 2
        %v1733 = vxor.u32 %v1716, 2147483648
        %v1734 = vsel %vm1732, %v1733, %v1724
        %v1735 = vsel %vm1728, %v1731, %v1734
        %v1736 = vsel %vm1725, nan, %v1735
        %v1737 = vand.u32 2147483647, %v489
        %vm1738 = vcmp.le.f32.partialorder %v1737, 0.7853982
        %vm1739 = vcmp.lt.s32.totalorder %v489, 0
        %v1740 = vand.u32 %v489, 2139095040
        %v1741 = vshrl.u32 %v1740, 23
        %v1742 = vsub.s32 %v1741, 127
        %v1743 = vand.u32 2147483647, %v489
        %v1744 = vand.u32 %v1743, 8388607
        %v1745 = vor.u32 %v1744, 8388608
        %v1746 = vsub.s32 0, %v1745
        %v1747 = vadd.s32 %v1742, 1
        %vm1748 = vcmp.gt.s32.totalorder %v1747, 0
        %v1749 = vsel %vm1748, %v1747, 0
        %v1750 = vshrl.u32 %v1749, 5
        %v1751 = vand.u32 %v1749, 31
        %v1752 = vsub.s32 32, %v1751
        %v1753 = vshrl.u32 683565275, %v1752
        %v1754 = vshll.u32 683565275, %v1751
        %v1755 = vshrl.u32 2475754826, %v1752
        %v1756 = vor.u32 %v1754, %v1755
        %v1757 = vshll.u32 2475754826, %v1751
        %v1758 = vshrl.u32 2131351028, %v1752
        %v1759 = vor.u32 %v1757, %v1758
        %v1760 = vshll.u32 2131351028, %v1751
        %v1761 = vshrl.u32 2102212464, %v1752
        %v1762 = vor.u32 %v1760, %v1761
        %v1763 = vshll.u32 2102212464, %v1751
        %v1764 = vshrl.u32 920167782, %v1752
        %v1765 = vor.u32 %v1763, %v1764
        %v1766 = vshll.u32 920167782, %v1751
        %v1767 = vshrl.u32 1326507024, %v1752
        %v1768 = vor.u32 %v1766, %v1767
        %vm1769 = vcmp.lt.s32.totalorder %v1750, 1
        %vm1770 = vcmp.lt.s32.totalorder %v1750, 2
        %vm1771 = vcmp.lt.s32.totalorder %v1750, 3
        %vm1772 = vcmp.lt.s32.totalorder %v1750, 4
        %v1773 = vsel %vm1769, %v1753, %v1756
        %v1774 = vsel %vm1772, %v1762, 2102212464
        %v1775 = vsel %vm1771, %v1759, %v1774
        %v1776 = vsel %vm1770, %v1773, %v1775
        %v1777 = vsel %vm1769, %v1756, %v1759
        %v1778 = vsel %vm1772, %v1765, 920167782
        %v1779 = vsel %vm1771, %v1762, %v1778
        %v1780 = vsel %vm1770, %v1777, %v1779
        %v1781 = vsel %vm1769, %v1759, %v1762
        %v1782 = vsel %vm1772, %v1768, 1326507024
        %v1783 = vsel %vm1771, %v1765, %v1782
        %v1784 = vsel %vm1770, %v1781, %v1783
        %v1785 = vshll.u32 %v1745, 8
        %v1786 = vand.u32 %v1785, 65535
        %v1787 = vshrl.u32 %v1785, 16
        %v1788 = vand.u32 %v1784, 65535
        %v1789 = vshrl.u32 %v1784, 16
        %v1790 = vmul.u32 %v1786, %v1788
        %v1791 = vmul.u32 %v1786, %v1789
        %v1792 = vmul.u32 %v1787, %v1788
        %v1793 = vmul.u32 %v1787, %v1789
        %v1794 = vshll.u32 %v1791, 16
        %v1795 = vshrl.u32 %v1791, 16
        %v1796 = vshll.u32 %v1792, 16
        %v1797 = vshrl.u32 %v1792, 16
        %vm1798 = vc.u32 %v1790, %v1794
        %v1799 = vsel %vm1798, 1, 0
        %v1800 = vadd.s32 %v1790, %v1794
        %v1801 = vadd.s32 %v1793, %v1799
        %vm1802 = vc.u32 %v1800, %v1796
        %v1803 = vsel %vm1802, 1, 0
        %v1804 = vadd.s32 %v1800, %v1796
        %v1805 = vadd.s32 %v1801, %v1803
        %v1806 = vadd.s32 %v1805, %v1795
        %v1807 = vadd.s32 %v1806, %v1797
        %v1808 = vand.u32 %v1785, 65535
        %v1809 = vshrl.u32 %v1785, 16
        %v1810 = vand.u32 %v1780, 65535
        %v1811 = vshrl.u32 %v1780, 16
        %v1812 = vmul.u32 %v1808, %v1810
        %v1813 = vmul.u32 %v1808, %v1811
        %v1814 = vmul.u32 %v1809, %v1810
        %v1815 = vmul.u32 %v1809, %v1811
        %v1816 = vshll.u32 %v1813, 16
        %v1817 = vshrl.u32 %v1813, 16
        %v1818 = vshll.u32 %v1814, 16
        %v1819 = vshrl.u32 %v1814, 16
        %vm1820 = vc.u32 %v1812, %v1816
        %v1821 = vsel %vm1820, 1, 0
        %v1822 = vadd.s32 %v1812, %v1816
        %v1823 = vadd.s32 %v1815, %v1821
        %vm1824 = vc.u32 %v1822, %v1818
        %v1825 = vsel %vm1824, 1, 0
        %v1826 = vadd.s32 %v1822, %v1818
        %v1827 = vadd.s32 %v1823, %v1825
        %v1828 = vadd.s32 %v1827, %v1817
        %v1829 = vadd.s32 %v1828, %v1819
        %v1830 = vmul.u32 %v1785, %v1776
        %v1831 = vadd.s32 %v1807, %v1826
        %vm1832 = vc.u32 %v1807, %v1826
        %v1833 = vadd.s32 %v1829, 1
        %v1834 = vsel %vm1832, %v1833, %v1829
        %v1835 = vadd.s32 %v1830, %v1834
        %v1836 = vadd.s32 %v1835, 536870912
        %v1837 = vshrl.u32 %v1836, 30
        %v1838 = vshll.u32 %v1837, 30
        %v1839 = vsub.s32 %v1835, %v1838
        %vm1840 = vcmp.lt.s32.totalorder %v1839, 0
        %v1841 = vsub.s32 0, %v1839
        %v1842 = vsel %vm1840, %v1841, %v1839
        %v1843 = vclz %v1842
        %v1844 = vsub.s32 %v1843, 2
        %vm1845 = vcmp.gt.s32.totalorder 0, %v1844
        %v1846 = vsel %vm1845, 0, %v1844
        %v1847 = vsub.s32 32, %v1846
        %v1848 = vshll.u32 %v1839, %v1846
        %v1849 = vshrl.u32 %v1831, %v1847
        %v1850 = vor.u32 %v1848, %v1849
        %v1851 = vsub.s32 4294967266, %v1846
        %v1852 = vadd.s32 %v1851, 127
        %v1853 = vshll.u32 %v1852, 23
        %v1854 = vor.u32 4788187, %v1853
        %v1855 = vand.u32 2147483647, %v1854
        %v1857 = vcvt.s32.f32 %v1850
        %v1858 = vmul.f32 %v1857, %v1855
        %v1859 = vxor.u32 %v1858, 2147483648
        %v1860 = vsel %vm1739, %v1859, %v1858
        %v1861 = vsub.s32 4, %v1837
        %v1862 = vsel %vm1739, %v1861, %v1837
        %v1863 = vsel %vm1738, %v489, %v1860
        %v1864 = vsel %vm1738, 0, %v1862
        %v1865 = vmul.f32 %v1863, %v1863
        %v1866 = vmul.f32 %v1865, -0.001358992
        %v1867 = vadd.f32 %v1866, 0.041655596
        %v1868 = vmul.f32 %v1865, %v1867
        %v1869 = vadd.f32 %v1868, -0.4999988
        %v1870 = vmul.f32 %v1865, %v1869
        %v1871 = vadd.f32 1.0, %v1870
        %v1872 = vmul.f32 %v1863, %v1863
        %v1873 = vmul.f32 %v1872, -0.00019511016
        %v1874 = vadd.f32 %v1873, 0.008332121
        %v1875 = vmul.f32 %v1872, %v1874
        %v1876 = vadd.f32 %v1875, -0.16666654
        %v1877 = vmul.f32 %v1872, %v1876
        %v1878 = vadd.f32 %v1877, 1.0
        %v1879 = vmul.f32 %v1878, %v1863
        %vm1880 = vweird.f32 %v489
        %v1881 = vadd.s32 %v1864, 3
        %v1882 = vand.u32 %v1881, 3
        %vm1883 = vcmp.lt.s32.totalorder %v1882, 2
        %vm1884 = vcmp.eq.s32.totalorder %v1882, 0
        %v1885 = vxor.u32 %v1879, 2147483648
        %v1886 = vsel %vm1884, %v1871, %v1885
        %vm1887 = vcmp.eq.s32.totalorder %v1882, 2
        %v1888 = vxor.u32 %v1871, 2147483648
        %v1889 = vsel %vm1887, %v1888, %v1879
        %v1890 = vsel %vm1883, %v1886, %v1889
        %v1891 = vsel %vm1880, nan, %v1890
        %v1892 = vand.u32 2147483647, %v490
        %vm1893 = vcmp.le.f32.partialorder %v1892, 0.7853982
        %vm1894 = vcmp.lt.s32.totalorder %v490, 0
        %v1895 = vand.u32 %v490, 2139095040
        %v1896 = vshrl.u32 %v1895, 23
        %v1897 = vsub.s32 %v1896, 127
        %v1898 = vand.u32 2147483647, %v490
        %v1899 = vand.u32 %v1898, 8388607
        %v1900 = vor.u32 %v1899, 8388608
        %v1901 = vsub.s32 0, %v1900
        %v1902 = vadd.s32 %v1897, 1
        %vm1903 = vcmp.gt.s32.totalorder %v1902, 0
        %v1904 = vsel %vm1903, %v1902, 0
        %v1905 = vshrl.u32 %v1904, 5
        %v1906 = vand.u32 %v1904, 31
        %v1907 = vsub.s32 32, %v1906
        %v1908 = vshrl.u32 683565275, %v1907
        %v1909 = vshll.u32 683565275, %v1906
        %v1910 = vshrl.u32 2475754826, %v1907
        %v1911 = vor.u32 %v1909, %v1910
        %v1912 = vshll.u32 2475754826, %v1906
        %v1913 = vshrl.u32 2131351028, %v1907
        %v1914 = vor.u32 %v1912, %v1913
        %v1915 = vshll.u32 2131351028, %v1906
        %v1916 = vshrl.u32 2102212464, %v1907
        %v1917 = vor.u32 %v1915, %v1916
        %v1918 = vshll.u32 2102212464, %v1906
        %v1919 = vshrl.u32 920167782, %v1907
        %v1920 = vor.u32 %v1918, %v1919
        %v1921 = vshll.u32 920167782, %v1906
        %v1922 = vshrl.u32 1326507024, %v1907
        %v1923 = vor.u32 %v1921, %v1922
        %vm1924 = vcmp.lt.s32.totalorder %v1905, 1
        %vm1925 = vcmp.lt.s32.totalorder %v1905, 2
        %vm1926 = vcmp.lt.s32.totalorder %v1905, 3
        %vm1927 = vcmp.lt.s32.totalorder %v1905, 4
        %v1928 = vsel %vm1924, %v1908, %v1911
        %v1929 = vsel %vm1927, %v1917, 2102212464
        %v1930 = vsel %vm1926, %v1914, %v1929
        %v1931 = vsel %vm1925, %v1928, %v1930
        %v1932 = vsel %vm1924, %v1911, %v1914
        %v1933 = vsel %vm1927, %v1920, 920167782
        %v1934 = vsel %vm1926, %v1917, %v1933
        %v1935 = vsel %vm1925, %v1932, %v1934
        %v1936 = vsel %vm1924, %v1914, %v1917
        %v1937 = vsel %vm1927, %v1923, 1326507024
        %v1938 = vsel %vm1926, %v1920, %v1937
        %v1939 = vsel %vm1925, %v1936, %v1938
        %v1940 = vshll.u32 %v1900, 8
        %v1941 = vand.u32 %v1940, 65535
        %v1942 = vshrl.u32 %v1940, 16
        %v1943 = vand.u32 %v1939, 65535
        %v1944 = vshrl.u32 %v1939, 16
        %v1945 = vmul.u32 %v1941, %v1943
        %v1946 = vmul.u32 %v1941, %v1944
        %v1947 = vmul.u32 %v1942, %v1943
        %v1948 = vmul.u32 %v1942, %v1944
        %v1949 = vshll.u32 %v1946, 16
        %v1950 = vshrl.u32 %v1946, 16
        %v1951 = vshll.u32 %v1947, 16
        %v1952 = vshrl.u32 %v1947, 16
        %vm1953 = vc.u32 %v1945, %v1949
        %v1954 = vsel %vm1953, 1, 0
        %v1955 = vadd.s32 %v1945, %v1949
        %v1956 = vadd.s32 %v1948, %v1954
        %vm1957 = vc.u32 %v1955, %v1951
        %v1958 = vsel %vm1957, 1, 0
        %v1959 = vadd.s32 %v1955, %v1951
        %v1960 = vadd.s32 %v1956, %v1958
        %v1961 = vadd.s32 %v1960, %v1950
        %v1962 = vadd.s32 %v1961, %v1952
        %v1963 = vand.u32 %v1940, 65535
        %v1964 = vshrl.u32 %v1940, 16
        %v1965 = vand.u32 %v1935, 65535
        %v1966 = vshrl.u32 %v1935, 16
        %v1967 = vmul.u32 %v1963, %v1965
        %v1968 = vmul.u32 %v1963, %v1966
        %v1969 = vmul.u32 %v1964, %v1965
        %v1970 = vmul.u32 %v1964, %v1966
        %v1971 = vshll.u32 %v1968, 16
        %v1972 = vshrl.u32 %v1968, 16
        %v1973 = vshll.u32 %v1969, 16
        %v1974 = vshrl.u32 %v1969, 16
        %vm1975 = vc.u32 %v1967, %v1971
        %v1976 = vsel %vm1975, 1, 0
        %v1977 = vadd.s32 %v1967, %v1971
        %v1978 = vadd.s32 %v1970, %v1976
        %vm1979 = vc.u32 %v1977, %v1973
        %v1980 = vsel %vm1979, 1, 0
        %v1981 = vadd.s32 %v1977, %v1973
        %v1982 = vadd.s32 %v1978, %v1980
        %v1983 = vadd.s32 %v1982, %v1972
        %v1984 = vadd.s32 %v1983, %v1974
        %v1985 = vmul.u32 %v1940, %v1931
        %v1986 = vadd.s32 %v1962, %v1981
        %vm1987 = vc.u32 %v1962, %v1981
        %v1988 = vadd.s32 %v1984, 1
        %v1989 = vsel %vm1987, %v1988, %v1984
        %v1990 = vadd.s32 %v1985, %v1989
        %v1991 = vadd.s32 %v1990, 536870912
        %v1992 = vshrl.u32 %v1991, 30
        %v1993 = vshll.u32 %v1992, 30
        %v1994 = vsub.s32 %v1990, %v1993
        %vm1995 = vcmp.lt.s32.totalorder %v1994, 0
        %v1996 = vsub.s32 0, %v1994
        %v1997 = vsel %vm1995, %v1996, %v1994
        %v1998 = vclz %v1997
        %v1999 = vsub.s32 %v1998, 2
        %vm2000 = vcmp.gt.s32.totalorder 0, %v1999
        %v2001 = vsel %vm2000, 0, %v1999
        %v2002 = vsub.s32 32, %v2001
        %v2003 = vshll.u32 %v1994, %v2001
        %v2004 = vshrl.u32 %v1986, %v2002
        %v2005 = vor.u32 %v2003, %v2004
        %v2006 = vsub.s32 4294967266, %v2001
        %v2007 = vadd.s32 %v2006, 127
        %v2008 = vshll.u32 %v2007, 23
        %v2009 = vor.u32 4788187, %v2008
        %v2010 = vand.u32 2147483647, %v2009
        %v2012 = vcvt.s32.f32 %v2005
        %v2013 = vmul.f32 %v2012, %v2010
        %v2014 = vxor.u32 %v2013, 2147483648
        %v2015 = vsel %vm1894, %v2014, %v2013
        %v2016 = vsub.s32 4, %v1992
        %v2017 = vsel %vm1894, %v2016, %v1992
        %v2018 = vsel %vm1893, %v490, %v2015
        %v2019 = vsel %vm1893, 0, %v2017
        %v2020 = vmul.f32 %v2018, %v2018
        %v2021 = vmul.f32 %v2020, -0.001358992
        %v2022 = vadd.f32 %v2021, 0.041655596
        %v2023 = vmul.f32 %v2020, %v2022
        %v2024 = vadd.f32 %v2023, -0.4999988
        %v2025 = vmul.f32 %v2020, %v2024
        %v2026 = vadd.f32 1.0, %v2025
        %v2027 = vmul.f32 %v2018, %v2018
        %v2028 = vmul.f32 %v2027, -0.00019511016
        %v2029 = vadd.f32 %v2028, 0.008332121
        %v2030 = vmul.f32 %v2027, %v2029
        %v2031 = vadd.f32 %v2030, -0.16666654
        %v2032 = vmul.f32 %v2027, %v2031
        %v2033 = vadd.f32 %v2032, 1.0
        %v2034 = vmul.f32 %v2033, %v2018
        %vm2035 = vweird.f32 %v490
        %v2036 = vadd.s32 %v2019, 3
        %v2037 = vand.u32 %v2036, 3
        %vm2038 = vcmp.lt.s32.totalorder %v2037, 2
        %vm2039 = vcmp.eq.s32.totalorder %v2037, 0
        %v2040 = vxor.u32 %v2034, 2147483648
        %v2041 = vsel %vm2039, %v2026, %v2040
        %vm2042 = vcmp.eq.s32.totalorder %v2037, 2
        %v2043 = vxor.u32 %v2026, 2147483648
        %v2044 = vsel %vm2042, %v2043, %v2034
        %v2045 = vsel %vm2038, %v2041, %v2044
        %v2046 = vsel %vm2035, nan, %v2045
        %v2047 = vand.u32 2147483647, %v491
        %vm2048 = vcmp.le.f32.partialorder %v2047, 0.7853982
        %vm2049 = vcmp.lt.s32.totalorder %v491, 0
        %v2050 = vand.u32 %v491, 2139095040
        %v2051 = vshrl.u32 %v2050, 23
        %v2052 = vsub.s32 %v2051, 127
        %v2053 = vand.u32 2147483647, %v491
        %v2054 = vand.u32 %v2053, 8388607
        %v2055 = vor.u32 %v2054, 8388608
        %v2056 = vsub.s32 0, %v2055
        %v2057 = vadd.s32 %v2052, 1
        %vm2058 = vcmp.gt.s32.totalorder %v2057, 0
        %v2059 = vsel %vm2058, %v2057, 0
        %v2060 = vshrl.u32 %v2059, 5
        %v2061 = vand.u32 %v2059, 31
        %v2062 = vsub.s32 32, %v2061
        %v2063 = vshrl.u32 683565275, %v2062
        %v2064 = vshll.u32 683565275, %v2061
        %v2065 = vshrl.u32 2475754826, %v2062
        %v2066 = vor.u32 %v2064, %v2065
        %v2067 = vshll.u32 2475754826, %v2061
        %v2068 = vshrl.u32 2131351028, %v2062
        %v2069 = vor.u32 %v2067, %v2068
        %v2070 = vshll.u32 2131351028, %v2061
        %v2071 = vshrl.u32 2102212464, %v2062
        %v2072 = vor.u32 %v2070, %v2071
        %v2073 = vshll.u32 2102212464, %v2061
        %v2074 = vshrl.u32 920167782, %v2062
        %v2075 = vor.u32 %v2073, %v2074
        %v2076 = vshll.u32 920167782, %v2061
        %v2077 = vshrl.u32 1326507024, %v2062
        %v2078 = vor.u32 %v2076, %v2077
        %vm2079 = vcmp.lt.s32.totalorder %v2060, 1
        %vm2080 = vcmp.lt.s32.totalorder %v2060, 2
        %vm2081 = vcmp.lt.s32.totalorder %v2060, 3
        %vm2082 = vcmp.lt.s32.totalorder %v2060, 4
        %v2083 = vsel %vm2079, %v2063, %v2066
        %v2084 = vsel %vm2082, %v2072, 2102212464
        %v2085 = vsel %vm2081, %v2069, %v2084
        %v2086 = vsel %vm2080, %v2083, %v2085
        %v2087 = vsel %vm2079, %v2066, %v2069
        %v2088 = vsel %vm2082, %v2075, 920167782
        %v2089 = vsel %vm2081, %v2072, %v2088
        %v2090 = vsel %vm2080, %v2087, %v2089
        %v2091 = vsel %vm2079, %v2069, %v2072
        %v2092 = vsel %vm2082, %v2078, 1326507024
        %v2093 = vsel %vm2081, %v2075, %v2092
        %v2094 = vsel %vm2080, %v2091, %v2093
        %v2095 = vshll.u32 %v2055, 8
        %v2096 = vand.u32 %v2095, 65535
        %v2097 = vshrl.u32 %v2095, 16
        %v2098 = vand.u32 %v2094, 65535
        %v2099 = vshrl.u32 %v2094, 16
        %v2100 = vmul.u32 %v2096, %v2098
        %v2101 = vmul.u32 %v2096, %v2099
        %v2102 = vmul.u32 %v2097, %v2098
        %v2103 = vmul.u32 %v2097, %v2099
        %v2104 = vshll.u32 %v2101, 16
        %v2105 = vshrl.u32 %v2101, 16
        %v2106 = vshll.u32 %v2102, 16
        %v2107 = vshrl.u32 %v2102, 16
        %vm2108 = vc.u32 %v2100, %v2104
        %v2109 = vsel %vm2108, 1, 0
        %v2110 = vadd.s32 %v2100, %v2104
        %v2111 = vadd.s32 %v2103, %v2109
        %vm2112 = vc.u32 %v2110, %v2106
        %v2113 = vsel %vm2112, 1, 0
        %v2114 = vadd.s32 %v2110, %v2106
        %v2115 = vadd.s32 %v2111, %v2113
        %v2116 = vadd.s32 %v2115, %v2105
        %v2117 = vadd.s32 %v2116, %v2107
        %v2118 = vand.u32 %v2095, 65535
        %v2119 = vshrl.u32 %v2095, 16
        %v2120 = vand.u32 %v2090, 65535
        %v2121 = vshrl.u32 %v2090, 16
        %v2122 = vmul.u32 %v2118, %v2120
        %v2123 = vmul.u32 %v2118, %v2121
        %v2124 = vmul.u32 %v2119, %v2120
        %v2125 = vmul.u32 %v2119, %v2121
        %v2126 = vshll.u32 %v2123, 16
        %v2127 = vshrl.u32 %v2123, 16
        %v2128 = vshll.u32 %v2124, 16
        %v2129 = vshrl.u32 %v2124, 16
        %vm2130 = vc.u32 %v2122, %v2126
        %v2131 = vsel %vm2130, 1, 0
        %v2132 = vadd.s32 %v2122, %v2126
        %v2133 = vadd.s32 %v2125, %v2131
        %vm2134 = vc.u32 %v2132, %v2128
        %v2135 = vsel %vm2134, 1, 0
        %v2136 = vadd.s32 %v2132, %v2128
        %v2137 = vadd.s32 %v2133, %v2135
        %v2138 = vadd.s32 %v2137, %v2127
        %v2139 = vadd.s32 %v2138, %v2129
        %v2140 = vmul.u32 %v2095, %v2086
        %v2141 = vadd.s32 %v2117, %v2136
        %vm2142 = vc.u32 %v2117, %v2136
        %v2143 = vadd.s32 %v2139, 1
        %v2144 = vsel %vm2142, %v2143, %v2139
        %v2145 = vadd.s32 %v2140, %v2144
        %v2146 = vadd.s32 %v2145, 536870912
        %v2147 = vshrl.u32 %v2146, 30
        %v2148 = vshll.u32 %v2147, 30
        %v2149 = vsub.s32 %v2145, %v2148
        %vm2150 = vcmp.lt.s32.totalorder %v2149, 0
        %v2151 = vsub.s32 0, %v2149
        %v2152 = vsel %vm2150, %v2151, %v2149
        %v2153 = vclz %v2152
        %v2154 = vsub.s32 %v2153, 2
        %vm2155 = vcmp.gt.s32.totalorder 0, %v2154
        %v2156 = vsel %vm2155, 0, %v2154
        %v2157 = vsub.s32 32, %v2156
        %v2158 = vshll.u32 %v2149, %v2156
        %v2159 = vshrl.u32 %v2141, %v2157
        %v2160 = vor.u32 %v2158, %v2159
        %v2161 = vsub.s32 4294967266, %v2156
        %v2162 = vadd.s32 %v2161, 127
        %v2163 = vshll.u32 %v2162, 23
        %v2164 = vor.u32 4788187, %v2163
        %v2165 = vand.u32 2147483647, %v2164
        %v2167 = vcvt.s32.f32 %v2160
        %v2168 = vmul.f32 %v2167, %v2165
        %v2169 = vxor.u32 %v2168, 2147483648
        %v2170 = vsel %vm2049, %v2169, %v2168
        %v2171 = vsub.s32 4, %v2147
        %v2172 = vsel %vm2049, %v2171, %v2147
        %v2173 = vsel %vm2048, %v491, %v2170
        %v2174 = vsel %vm2048, 0, %v2172
        %v2175 = vmul.f32 %v2173, %v2173
        %v2176 = vmul.f32 %v2175, -0.001358992
        %v2177 = vadd.f32 %v2176, 0.041655596
        %v2178 = vmul.f32 %v2175, %v2177
        %v2179 = vadd.f32 %v2178, -0.4999988
        %v2180 = vmul.f32 %v2175, %v2179
        %v2181 = vadd.f32 1.0, %v2180
        %v2182 = vmul.f32 %v2173, %v2173
        %v2183 = vmul.f32 %v2182, -0.00019511016
        %v2184 = vadd.f32 %v2183, 0.008332121
        %v2185 = vmul.f32 %v2182, %v2184
        %v2186 = vadd.f32 %v2185, -0.16666654
        %v2187 = vmul.f32 %v2182, %v2186
        %v2188 = vadd.f32 %v2187, 1.0
        %v2189 = vmul.f32 %v2188, %v2173
        %vm2190 = vweird.f32 %v491
        %v2191 = vadd.s32 %v2174, 3
        %v2192 = vand.u32 %v2191, 3
        %vm2193 = vcmp.lt.s32.totalorder %v2192, 2
        %vm2194 = vcmp.eq.s32.totalorder %v2192, 0
        %v2195 = vxor.u32 %v2189, 2147483648
        %v2196 = vsel %vm2194, %v2181, %v2195
        %vm2197 = vcmp.eq.s32.totalorder %v2192, 2
        %v2198 = vxor.u32 %v2181, 2147483648
        %v2199 = vsel %vm2197, %v2198, %v2189
        %v2200 = vsel %vm2193, %v2196, %v2199
        %v2201 = vsel %vm2190, nan, %v2200
        %v2202 = vand.u32 2147483647, %v492
        %vm2203 = vcmp.le.f32.partialorder %v2202, 0.7853982
        %vm2204 = vcmp.lt.s32.totalorder %v492, 0
        %v2205 = vand.u32 %v492, 2139095040
        %v2206 = vshrl.u32 %v2205, 23
        %v2207 = vsub.s32 %v2206, 127
        %v2208 = vand.u32 2147483647, %v492
        %v2209 = vand.u32 %v2208, 8388607
        %v2210 = vor.u32 %v2209, 8388608
        %v2211 = vsub.s32 0, %v2210
        %v2212 = vadd.s32 %v2207, 1
        %vm2213 = vcmp.gt.s32.totalorder %v2212, 0
        %v2214 = vsel %vm2213, %v2212, 0
        %v2215 = vshrl.u32 %v2214, 5
        %v2216 = vand.u32 %v2214, 31
        %v2217 = vsub.s32 32, %v2216
        %v2218 = vshrl.u32 683565275, %v2217
        %v2219 = vshll.u32 683565275, %v2216
        %v2220 = vshrl.u32 2475754826, %v2217
        %v2221 = vor.u32 %v2219, %v2220
        %v2222 = vshll.u32 2475754826, %v2216
        %v2223 = vshrl.u32 2131351028, %v2217
        %v2224 = vor.u32 %v2222, %v2223
        %v2225 = vshll.u32 2131351028, %v2216
        %v2226 = vshrl.u32 2102212464, %v2217
        %v2227 = vor.u32 %v2225, %v2226
        %v2228 = vshll.u32 2102212464, %v2216
        %v2229 = vshrl.u32 920167782, %v2217
        %v2230 = vor.u32 %v2228, %v2229
        %v2231 = vshll.u32 920167782, %v2216
        %v2232 = vshrl.u32 1326507024, %v2217
        %v2233 = vor.u32 %v2231, %v2232
        %vm2234 = vcmp.lt.s32.totalorder %v2215, 1
        %vm2235 = vcmp.lt.s32.totalorder %v2215, 2
        %vm2236 = vcmp.lt.s32.totalorder %v2215, 3
        %vm2237 = vcmp.lt.s32.totalorder %v2215, 4
        %v2238 = vsel %vm2234, %v2218, %v2221
        %v2239 = vsel %vm2237, %v2227, 2102212464
        %v2240 = vsel %vm2236, %v2224, %v2239
        %v2241 = vsel %vm2235, %v2238, %v2240
        %v2242 = vsel %vm2234, %v2221, %v2224
        %v2243 = vsel %vm2237, %v2230, 920167782
        %v2244 = vsel %vm2236, %v2227, %v2243
        %v2245 = vsel %vm2235, %v2242, %v2244
        %v2246 = vsel %vm2234, %v2224, %v2227
        %v2247 = vsel %vm2237, %v2233, 1326507024
        %v2248 = vsel %vm2236, %v2230, %v2247
        %v2249 = vsel %vm2235, %v2246, %v2248
        %v2250 = vshll.u32 %v2210, 8
        %v2251 = vand.u32 %v2250, 65535
        %v2252 = vshrl.u32 %v2250, 16
        %v2253 = vand.u32 %v2249, 65535
        %v2254 = vshrl.u32 %v2249, 16
        %v2255 = vmul.u32 %v2251, %v2253
        %v2256 = vmul.u32 %v2251, %v2254
        %v2257 = vmul.u32 %v2252, %v2253
        %v2258 = vmul.u32 %v2252, %v2254
        %v2259 = vshll.u32 %v2256, 16
        %v2260 = vshrl.u32 %v2256, 16
        %v2261 = vshll.u32 %v2257, 16
        %v2262 = vshrl.u32 %v2257, 16
        %vm2263 = vc.u32 %v2255, %v2259
        %v2264 = vsel %vm2263, 1, 0
        %v2265 = vadd.s32 %v2255, %v2259
        %v2266 = vadd.s32 %v2258, %v2264
        %vm2267 = vc.u32 %v2265, %v2261
        %v2268 = vsel %vm2267, 1, 0
        %v2269 = vadd.s32 %v2265, %v2261
        %v2270 = vadd.s32 %v2266, %v2268
        %v2271 = vadd.s32 %v2270, %v2260
        %v2272 = vadd.s32 %v2271, %v2262
        %v2273 = vand.u32 %v2250, 65535
        %v2274 = vshrl.u32 %v2250, 16
        %v2275 = vand.u32 %v2245, 65535
        %v2276 = vshrl.u32 %v2245, 16
        %v2277 = vmul.u32 %v2273, %v2275
        %v2278 = vmul.u32 %v2273, %v2276
        %v2279 = vmul.u32 %v2274, %v2275
        %v2280 = vmul.u32 %v2274, %v2276
        %v2281 = vshll.u32 %v2278, 16
        %v2282 = vshrl.u32 %v2278, 16
        %v2283 = vshll.u32 %v2279, 16
        %v2284 = vshrl.u32 %v2279, 16
        %vm2285 = vc.u32 %v2277, %v2281
        %v2286 = vsel %vm2285, 1, 0
        %v2287 = vadd.s32 %v2277, %v2281
        %v2288 = vadd.s32 %v2280, %v2286
        %vm2289 = vc.u32 %v2287, %v2283
        %v2290 = vsel %vm2289, 1, 0
        %v2291 = vadd.s32 %v2287, %v2283
        %v2292 = vadd.s32 %v2288, %v2290
        %v2293 = vadd.s32 %v2292, %v2282
        %v2294 = vadd.s32 %v2293, %v2284
        %v2295 = vmul.u32 %v2250, %v2241
        %v2296 = vadd.s32 %v2272, %v2291
        %vm2297 = vc.u32 %v2272, %v2291
        %v2298 = vadd.s32 %v2294, 1
        %v2299 = vsel %vm2297, %v2298, %v2294
        %v2300 = vadd.s32 %v2295, %v2299
        %v2301 = vadd.s32 %v2300, 536870912
        %v2302 = vshrl.u32 %v2301, 30
        %v2303 = vshll.u32 %v2302, 30
        %v2304 = vsub.s32 %v2300, %v2303
        %vm2305 = vcmp.lt.s32.totalorder %v2304, 0
        %v2306 = vsub.s32 0, %v2304
        %v2307 = vsel %vm2305, %v2306, %v2304
        %v2308 = vclz %v2307
        %v2309 = vsub.s32 %v2308, 2
        %vm2310 = vcmp.gt.s32.totalorder 0, %v2309
        %v2311 = vsel %vm2310, 0, %v2309
        %v2312 = vsub.s32 32, %v2311
        %v2313 = vshll.u32 %v2304, %v2311
        %v2314 = vshrl.u32 %v2296, %v2312
        %v2315 = vor.u32 %v2313, %v2314
        %v2316 = vsub.s32 4294967266, %v2311
        %v2317 = vadd.s32 %v2316, 127
        %v2318 = vshll.u32 %v2317, 23
        %v2319 = vor.u32 4788187, %v2318
        %v2320 = vand.u32 2147483647, %v2319
        %v2322 = vcvt.s32.f32 %v2315
        %v2323 = vmul.f32 %v2322, %v2320
        %v2324 = vxor.u32 %v2323, 2147483648
        %v2325 = vsel %vm2204, %v2324, %v2323
        %v2326 = vsub.s32 4, %v2302
        %v2327 = vsel %vm2204, %v2326, %v2302
        %v2328 = vsel %vm2203, %v492, %v2325
        %v2329 = vsel %vm2203, 0, %v2327
        %v2330 = vmul.f32 %v2328, %v2328
        %v2331 = vmul.f32 %v2330, -0.001358992
        %v2332 = vadd.f32 %v2331, 0.041655596
        %v2333 = vmul.f32 %v2330, %v2332
        %v2334 = vadd.f32 %v2333, -0.4999988
        %v2335 = vmul.f32 %v2330, %v2334
        %v2336 = vadd.f32 1.0, %v2335
        %v2337 = vmul.f32 %v2328, %v2328
        %v2338 = vmul.f32 %v2337, -0.00019511016
        %v2339 = vadd.f32 %v2338, 0.008332121
        %v2340 = vmul.f32 %v2337, %v2339
        %v2341 = vadd.f32 %v2340, -0.16666654
        %v2342 = vmul.f32 %v2337, %v2341
        %v2343 = vadd.f32 %v2342, 1.0
        %v2344 = vmul.f32 %v2343, %v2328
        %vm2345 = vweird.f32 %v492
        %v2346 = vadd.s32 %v2329, 3
        %v2347 = vand.u32 %v2346, 3
        %vm2348 = vcmp.lt.s32.totalorder %v2347, 2
        %vm2349 = vcmp.eq.s32.totalorder %v2347, 0
        %v2350 = vxor.u32 %v2344, 2147483648
        %v2351 = vsel %vm2349, %v2336, %v2350
        %vm2352 = vcmp.eq.s32.totalorder %v2347, 2
        %v2353 = vxor.u32 %v2336, 2147483648
        %v2354 = vsel %vm2352, %v2353, %v2344
        %v2355 = vsel %vm2348, %v2351, %v2354
        %v2356 = vsel %vm2345, nan, %v2355
        %v2357 = vand.u32 2147483647, %v493
        %vm2358 = vcmp.le.f32.partialorder %v2357, 0.7853982
        %vm2359 = vcmp.lt.s32.totalorder %v493, 0
        %v2360 = vand.u32 %v493, 2139095040
        %v2361 = vshrl.u32 %v2360, 23
        %v2362 = vsub.s32 %v2361, 127
        %v2363 = vand.u32 2147483647, %v493
        %v2364 = vand.u32 %v2363, 8388607
        %v2365 = vor.u32 %v2364, 8388608
        %v2366 = vsub.s32 0, %v2365
        %v2367 = vadd.s32 %v2362, 1
        %vm2368 = vcmp.gt.s32.totalorder %v2367, 0
        %v2369 = vsel %vm2368, %v2367, 0
        %v2370 = vshrl.u32 %v2369, 5
        %v2371 = vand.u32 %v2369, 31
        %v2372 = vsub.s32 32, %v2371
        %v2373 = vshrl.u32 683565275, %v2372
        %v2374 = vshll.u32 683565275, %v2371
        %v2375 = vshrl.u32 2475754826, %v2372
        %v2376 = vor.u32 %v2374, %v2375
        %v2377 = vshll.u32 2475754826, %v2371
        %v2378 = vshrl.u32 2131351028, %v2372
        %v2379 = vor.u32 %v2377, %v2378
        %v2380 = vshll.u32 2131351028, %v2371
        %v2381 = vshrl.u32 2102212464, %v2372
        %v2382 = vor.u32 %v2380, %v2381
        %v2383 = vshll.u32 2102212464, %v2371
        %v2384 = vshrl.u32 920167782, %v2372
        %v2385 = vor.u32 %v2383, %v2384
        %v2386 = vshll.u32 920167782, %v2371
        %v2387 = vshrl.u32 1326507024, %v2372
        %v2388 = vor.u32 %v2386, %v2387
        %vm2389 = vcmp.lt.s32.totalorder %v2370, 1
        %vm2390 = vcmp.lt.s32.totalorder %v2370, 2
        %vm2391 = vcmp.lt.s32.totalorder %v2370, 3
        %vm2392 = vcmp.lt.s32.totalorder %v2370, 4
        %v2393 = vsel %vm2389, %v2373, %v2376
        %v2394 = vsel %vm2392, %v2382, 2102212464
        %v2395 = vsel %vm2391, %v2379, %v2394
        %v2396 = vsel %vm2390, %v2393, %v2395
        %v2397 = vsel %vm2389, %v2376, %v2379
        %v2398 = vsel %vm2392, %v2385, 920167782
        %v2399 = vsel %vm2391, %v2382, %v2398
        %v2400 = vsel %vm2390, %v2397, %v2399
        %v2401 = vsel %vm2389, %v2379, %v2382
        %v2402 = vsel %vm2392, %v2388, 1326507024
        %v2403 = vsel %vm2391, %v2385, %v2402
        %v2404 = vsel %vm2390, %v2401, %v2403
        %v2405 = vshll.u32 %v2365, 8
        %v2406 = vand.u32 %v2405, 65535
        %v2407 = vshrl.u32 %v2405, 16
        %v2408 = vand.u32 %v2404, 65535
        %v2409 = vshrl.u32 %v2404, 16
        %v2410 = vmul.u32 %v2406, %v2408
        %v2411 = vmul.u32 %v2406, %v2409
        %v2412 = vmul.u32 %v2407, %v2408
        %v2413 = vmul.u32 %v2407, %v2409
        %v2414 = vshll.u32 %v2411, 16
        %v2415 = vshrl.u32 %v2411, 16
        %v2416 = vshll.u32 %v2412, 16
        %v2417 = vshrl.u32 %v2412, 16
        %vm2418 = vc.u32 %v2410, %v2414
        %v2419 = vsel %vm2418, 1, 0
        %v2420 = vadd.s32 %v2410, %v2414
        %v2421 = vadd.s32 %v2413, %v2419
        %vm2422 = vc.u32 %v2420, %v2416
        %v2423 = vsel %vm2422, 1, 0
        %v2424 = vadd.s32 %v2420, %v2416
        %v2425 = vadd.s32 %v2421, %v2423
        %v2426 = vadd.s32 %v2425, %v2415
        %v2427 = vadd.s32 %v2426, %v2417
        %v2428 = vand.u32 %v2405, 65535
        %v2429 = vshrl.u32 %v2405, 16
        %v2430 = vand.u32 %v2400, 65535
        %v2431 = vshrl.u32 %v2400, 16
        %v2432 = vmul.u32 %v2428, %v2430
        %v2433 = vmul.u32 %v2428, %v2431
        %v2434 = vmul.u32 %v2429, %v2430
        %v2435 = vmul.u32 %v2429, %v2431
        %v2436 = vshll.u32 %v2433, 16
        %v2437 = vshrl.u32 %v2433, 16
        %v2438 = vshll.u32 %v2434, 16
        %v2439 = vshrl.u32 %v2434, 16
        %vm2440 = vc.u32 %v2432, %v2436
        %v2441 = vsel %vm2440, 1, 0
        %v2442 = vadd.s32 %v2432, %v2436
        %v2443 = vadd.s32 %v2435, %v2441
        %vm2444 = vc.u32 %v2442, %v2438
        %v2445 = vsel %vm2444, 1, 0
        %v2446 = vadd.s32 %v2442, %v2438
        %v2447 = vadd.s32 %v2443, %v2445
        %v2448 = vadd.s32 %v2447, %v2437
        %v2449 = vadd.s32 %v2448, %v2439
        %v2450 = vmul.u32 %v2405, %v2396
        %v2451 = vadd.s32 %v2427, %v2446
        %vm2452 = vc.u32 %v2427, %v2446
        %v2453 = vadd.s32 %v2449, 1
        %v2454 = vsel %vm2452, %v2453, %v2449
        %v2455 = vadd.s32 %v2450, %v2454
        %v2456 = vadd.s32 %v2455, 536870912
        %v2457 = vshrl.u32 %v2456, 30
        %v2458 = vshll.u32 %v2457, 30
        %v2459 = vsub.s32 %v2455, %v2458
        %vm2460 = vcmp.lt.s32.totalorder %v2459, 0
        %v2461 = vsub.s32 0, %v2459
        %v2462 = vsel %vm2460, %v2461, %v2459
        %v2463 = vclz %v2462
        %v2464 = vsub.s32 %v2463, 2
        %vm2465 = vcmp.gt.s32.totalorder 0, %v2464
        %v2466 = vsel %vm2465, 0, %v2464
        %v2467 = vsub.s32 32, %v2466
        %v2468 = vshll.u32 %v2459, %v2466
        %v2469 = vshrl.u32 %v2451, %v2467
        %v2470 = vor.u32 %v2468, %v2469
        %v2471 = vsub.s32 4294967266, %v2466
        %v2472 = vadd.s32 %v2471, 127
        %v2473 = vshll.u32 %v2472, 23
        %v2474 = vor.u32 4788187, %v2473
        %v2475 = vand.u32 2147483647, %v2474
        %v2477 = vcvt.s32.f32 %v2470
        %v2478 = vmul.f32 %v2477, %v2475
        %v2479 = vxor.u32 %v2478, 2147483648
        %v2480 = vsel %vm2359, %v2479, %v2478
        %v2481 = vsub.s32 4, %v2457
        %v2482 = vsel %vm2359, %v2481, %v2457
        %v2483 = vsel %vm2358, %v493, %v2480
        %v2484 = vsel %vm2358, 0, %v2482
        %v2485 = vmul.f32 %v2483, %v2483
        %v2486 = vmul.f32 %v2485, -0.001358992
        %v2487 = vadd.f32 %v2486, 0.041655596
        %v2488 = vmul.f32 %v2485, %v2487
        %v2489 = vadd.f32 %v2488, -0.4999988
        %v2490 = vmul.f32 %v2485, %v2489
        %v2491 = vadd.f32 1.0, %v2490
        %v2492 = vmul.f32 %v2483, %v2483
        %v2493 = vmul.f32 %v2492, -0.00019511016
        %v2494 = vadd.f32 %v2493, 0.008332121
        %v2495 = vmul.f32 %v2492, %v2494
        %v2496 = vadd.f32 %v2495, -0.16666654
        %v2497 = vmul.f32 %v2492, %v2496
        %v2498 = vadd.f32 %v2497, 1.0
        %v2499 = vmul.f32 %v2498, %v2483
        %vm2500 = vweird.f32 %v493
        %v2501 = vadd.s32 %v2484, 3
        %v2502 = vand.u32 %v2501, 3
        %vm2503 = vcmp.lt.s32.totalorder %v2502, 2
        %vm2504 = vcmp.eq.s32.totalorder %v2502, 0
        %v2505 = vxor.u32 %v2499, 2147483648
        %v2506 = vsel %vm2504, %v2491, %v2505
        %vm2507 = vcmp.eq.s32.totalorder %v2502, 2
        %v2508 = vxor.u32 %v2491, 2147483648
        %v2509 = vsel %vm2507, %v2508, %v2499
        %v2510 = vsel %vm2503, %v2506, %v2509
        %v2511 = vsel %vm2500, nan, %v2510
        %v2512 = vand.u32 2147483647, %v494
        %vm2513 = vcmp.le.f32.partialorder %v2512, 0.7853982
        %vm2514 = vcmp.lt.s32.totalorder %v494, 0
        %v2515 = vand.u32 %v494, 2139095040
        %v2516 = vshrl.u32 %v2515, 23
        %v2517 = vsub.s32 %v2516, 127
        %v2518 = vand.u32 2147483647, %v494
        %v2519 = vand.u32 %v2518, 8388607
        %v2520 = vor.u32 %v2519, 8388608
        %v2521 = vsub.s32 0, %v2520
        %v2522 = vadd.s32 %v2517, 1
        %vm2523 = vcmp.gt.s32.totalorder %v2522, 0
        %v2524 = vsel %vm2523, %v2522, 0
        %v2525 = vshrl.u32 %v2524, 5
        %v2526 = vand.u32 %v2524, 31
        %v2527 = vsub.s32 32, %v2526
        %v2528 = vshrl.u32 683565275, %v2527
        %v2529 = vshll.u32 683565275, %v2526
        %v2530 = vshrl.u32 2475754826, %v2527
        %v2531 = vor.u32 %v2529, %v2530
        %v2532 = vshll.u32 2475754826, %v2526
        %v2533 = vshrl.u32 2131351028, %v2527
        %v2534 = vor.u32 %v2532, %v2533
        %v2535 = vshll.u32 2131351028, %v2526
        %v2536 = vshrl.u32 2102212464, %v2527
        %v2537 = vor.u32 %v2535, %v2536
        %v2538 = vshll.u32 2102212464, %v2526
        %v2539 = vshrl.u32 920167782, %v2527
        %v2540 = vor.u32 %v2538, %v2539
        %v2541 = vshll.u32 920167782, %v2526
        %v2542 = vshrl.u32 1326507024, %v2527
        %v2543 = vor.u32 %v2541, %v2542
        %vm2544 = vcmp.lt.s32.totalorder %v2525, 1
        %vm2545 = vcmp.lt.s32.totalorder %v2525, 2
        %vm2546 = vcmp.lt.s32.totalorder %v2525, 3
        %vm2547 = vcmp.lt.s32.totalorder %v2525, 4
        %v2548 = vsel %vm2544, %v2528, %v2531
        %v2549 = vsel %vm2547, %v2537, 2102212464
        %v2550 = vsel %vm2546, %v2534, %v2549
        %v2551 = vsel %vm2545, %v2548, %v2550
        %v2552 = vsel %vm2544, %v2531, %v2534
        %v2553 = vsel %vm2547, %v2540, 920167782
        %v2554 = vsel %vm2546, %v2537, %v2553
        %v2555 = vsel %vm2545, %v2552, %v2554
        %v2556 = vsel %vm2544, %v2534, %v2537
        %v2557 = vsel %vm2547, %v2543, 1326507024
        %v2558 = vsel %vm2546, %v2540, %v2557
        %v2559 = vsel %vm2545, %v2556, %v2558
        %v2560 = vshll.u32 %v2520, 8
        %v2561 = vand.u32 %v2560, 65535
        %v2562 = vshrl.u32 %v2560, 16
        %v2563 = vand.u32 %v2559, 65535
        %v2564 = vshrl.u32 %v2559, 16
        %v2565 = vmul.u32 %v2561, %v2563
        %v2566 = vmul.u32 %v2561, %v2564
        %v2567 = vmul.u32 %v2562, %v2563
        %v2568 = vmul.u32 %v2562, %v2564
        %v2569 = vshll.u32 %v2566, 16
        %v2570 = vshrl.u32 %v2566, 16
        %v2571 = vshll.u32 %v2567, 16
        %v2572 = vshrl.u32 %v2567, 16
        %vm2573 = vc.u32 %v2565, %v2569
        %v2574 = vsel %vm2573, 1, 0
        %v2575 = vadd.s32 %v2565, %v2569
        %v2576 = vadd.s32 %v2568, %v2574
        %vm2577 = vc.u32 %v2575, %v2571
        %v2578 = vsel %vm2577, 1, 0
        %v2579 = vadd.s32 %v2575, %v2571
        %v2580 = vadd.s32 %v2576, %v2578
        %v2581 = vadd.s32 %v2580, %v2570
        %v2582 = vadd.s32 %v2581, %v2572
        %v2583 = vand.u32 %v2560, 65535
        %v2584 = vshrl.u32 %v2560, 16
        %v2585 = vand.u32 %v2555, 65535
        %v2586 = vshrl.u32 %v2555, 16
        %v2587 = vmul.u32 %v2583, %v2585
        %v2588 = vmul.u32 %v2583, %v2586
        %v2589 = vmul.u32 %v2584, %v2585
        %v2590 = vmul.u32 %v2584, %v2586
        %v2591 = vshll.u32 %v2588, 16
        %v2592 = vshrl.u32 %v2588, 16
        %v2593 = vshll.u32 %v2589, 16
        %v2594 = vshrl.u32 %v2589, 16
        %vm2595 = vc.u32 %v2587, %v2591
        %v2596 = vsel %vm2595, 1, 0
        %v2597 = vadd.s32 %v2587, %v2591
        %v2598 = vadd.s32 %v2590, %v2596
        %vm2599 = vc.u32 %v2597, %v2593
        %v2600 = vsel %vm2599, 1, 0
        %v2601 = vadd.s32 %v2597, %v2593
        %v2602 = vadd.s32 %v2598, %v2600
        %v2603 = vadd.s32 %v2602, %v2592
        %v2604 = vadd.s32 %v2603, %v2594
        %v2605 = vmul.u32 %v2560, %v2551
        %v2606 = vadd.s32 %v2582, %v2601
        %vm2607 = vc.u32 %v2582, %v2601
        %v2608 = vadd.s32 %v2604, 1
        %v2609 = vsel %vm2607, %v2608, %v2604
        %v2610 = vadd.s32 %v2605, %v2609
        %v2611 = vadd.s32 %v2610, 536870912
        %v2612 = vshrl.u32 %v2611, 30
        %v2613 = vshll.u32 %v2612, 30
        %v2614 = vsub.s32 %v2610, %v2613
        %vm2615 = vcmp.lt.s32.totalorder %v2614, 0
        %v2616 = vsub.s32 0, %v2614
        %v2617 = vsel %vm2615, %v2616, %v2614
        %v2618 = vclz %v2617
        %v2619 = vsub.s32 %v2618, 2
        %vm2620 = vcmp.gt.s32.totalorder 0, %v2619
        %v2621 = vsel %vm2620, 0, %v2619
        %v2622 = vsub.s32 32, %v2621
        %v2623 = vshll.u32 %v2614, %v2621
        %v2624 = vshrl.u32 %v2606, %v2622
        %v2625 = vor.u32 %v2623, %v2624
        %v2626 = vsub.s32 4294967266, %v2621
        %v2627 = vadd.s32 %v2626, 127
        %v2628 = vshll.u32 %v2627, 23
        %v2629 = vor.u32 4788187, %v2628
        %v2630 = vand.u32 2147483647, %v2629
        %v2632 = vcvt.s32.f32 %v2625
        %v2633 = vmul.f32 %v2632, %v2630
        %v2634 = vxor.u32 %v2633, 2147483648
        %v2635 = vsel %vm2514, %v2634, %v2633
        %v2636 = vsub.s32 4, %v2612
        %v2637 = vsel %vm2514, %v2636, %v2612
        %v2638 = vsel %vm2513, %v494, %v2635
        %v2639 = vsel %vm2513, 0, %v2637
        %v2640 = vmul.f32 %v2638, %v2638
        %v2641 = vmul.f32 %v2640, -0.001358992
        %v2642 = vadd.f32 %v2641, 0.041655596
        %v2643 = vmul.f32 %v2640, %v2642
        %v2644 = vadd.f32 %v2643, -0.4999988
        %v2645 = vmul.f32 %v2640, %v2644
        %v2646 = vadd.f32 1.0, %v2645
        %v2647 = vmul.f32 %v2638, %v2638
        %v2648 = vmul.f32 %v2647, -0.00019511016
        %v2649 = vadd.f32 %v2648, 0.008332121
        %v2650 = vmul.f32 %v2647, %v2649
        %v2651 = vadd.f32 %v2650, -0.16666654
        %v2652 = vmul.f32 %v2647, %v2651
        %v2653 = vadd.f32 %v2652, 1.0
        %v2654 = vmul.f32 %v2653, %v2638
        %vm2655 = vweird.f32 %v494
        %v2656 = vadd.s32 %v2639, 3
        %v2657 = vand.u32 %v2656, 3
        %vm2658 = vcmp.lt.s32.totalorder %v2657, 2
        %vm2659 = vcmp.eq.s32.totalorder %v2657, 0
        %v2660 = vxor.u32 %v2654, 2147483648
        %v2661 = vsel %vm2659, %v2646, %v2660
        %vm2662 = vcmp.eq.s32.totalorder %v2657, 2
        %v2663 = vxor.u32 %v2646, 2147483648
        %v2664 = vsel %vm2662, %v2663, %v2654
        %v2665 = vsel %vm2658, %v2661, %v2664
        %v2666 = vsel %vm2655, nan, %v2665
        %v2667 = vand.u32 2147483647, %v495
        %vm2668 = vcmp.le.f32.partialorder %v2667, 0.7853982
        %vm2669 = vcmp.lt.s32.totalorder %v495, 0
        %v2670 = vand.u32 %v495, 2139095040
        %v2671 = vshrl.u32 %v2670, 23
        %v2672 = vsub.s32 %v2671, 127
        %v2673 = vand.u32 2147483647, %v495
        %v2674 = vand.u32 %v2673, 8388607
        %v2675 = vor.u32 %v2674, 8388608
        %v2676 = vsub.s32 0, %v2675
        %v2677 = vadd.s32 %v2672, 1
        %vm2678 = vcmp.gt.s32.totalorder %v2677, 0
        %v2679 = vsel %vm2678, %v2677, 0
        %v2680 = vshrl.u32 %v2679, 5
        %v2681 = vand.u32 %v2679, 31
        %v2682 = vsub.s32 32, %v2681
        %v2683 = vshrl.u32 683565275, %v2682
        %v2684 = vshll.u32 683565275, %v2681
        %v2685 = vshrl.u32 2475754826, %v2682
        %v2686 = vor.u32 %v2684, %v2685
        %v2687 = vshll.u32 2475754826, %v2681
        %v2688 = vshrl.u32 2131351028, %v2682
        %v2689 = vor.u32 %v2687, %v2688
        %v2690 = vshll.u32 2131351028, %v2681
        %v2691 = vshrl.u32 2102212464, %v2682
        %v2692 = vor.u32 %v2690, %v2691
        %v2693 = vshll.u32 2102212464, %v2681
        %v2694 = vshrl.u32 920167782, %v2682
        %v2695 = vor.u32 %v2693, %v2694
        %v2696 = vshll.u32 920167782, %v2681
        %v2697 = vshrl.u32 1326507024, %v2682
        %v2698 = vor.u32 %v2696, %v2697
        %vm2699 = vcmp.lt.s32.totalorder %v2680, 1
        %vm2700 = vcmp.lt.s32.totalorder %v2680, 2
        %vm2701 = vcmp.lt.s32.totalorder %v2680, 3
        %vm2702 = vcmp.lt.s32.totalorder %v2680, 4
        %v2703 = vsel %vm2699, %v2683, %v2686
        %v2704 = vsel %vm2702, %v2692, 2102212464
        %v2705 = vsel %vm2701, %v2689, %v2704
        %v2706 = vsel %vm2700, %v2703, %v2705
        %v2707 = vsel %vm2699, %v2686, %v2689
        %v2708 = vsel %vm2702, %v2695, 920167782
        %v2709 = vsel %vm2701, %v2692, %v2708
        %v2710 = vsel %vm2700, %v2707, %v2709
        %v2711 = vsel %vm2699, %v2689, %v2692
        %v2712 = vsel %vm2702, %v2698, 1326507024
        %v2713 = vsel %vm2701, %v2695, %v2712
        %v2714 = vsel %vm2700, %v2711, %v2713
        %v2715 = vshll.u32 %v2675, 8
        %v2716 = vand.u32 %v2715, 65535
        %v2717 = vshrl.u32 %v2715, 16
        %v2718 = vand.u32 %v2714, 65535
        %v2719 = vshrl.u32 %v2714, 16
        %v2720 = vmul.u32 %v2716, %v2718
        %v2721 = vmul.u32 %v2716, %v2719
        %v2722 = vmul.u32 %v2717, %v2718
        %v2723 = vmul.u32 %v2717, %v2719
        %v2724 = vshll.u32 %v2721, 16
        %v2725 = vshrl.u32 %v2721, 16
        %v2726 = vshll.u32 %v2722, 16
        %v2727 = vshrl.u32 %v2722, 16
        %vm2728 = vc.u32 %v2720, %v2724
        %v2729 = vsel %vm2728, 1, 0
        %v2730 = vadd.s32 %v2720, %v2724
        %v2731 = vadd.s32 %v2723, %v2729
        %vm2732 = vc.u32 %v2730, %v2726
        %v2733 = vsel %vm2732, 1, 0
        %v2734 = vadd.s32 %v2730, %v2726
        %v2735 = vadd.s32 %v2731, %v2733
        %v2736 = vadd.s32 %v2735, %v2725
        %v2737 = vadd.s32 %v2736, %v2727
        %v2738 = vand.u32 %v2715, 65535
        %v2739 = vshrl.u32 %v2715, 16
        %v2740 = vand.u32 %v2710, 65535
        %v2741 = vshrl.u32 %v2710, 16
        %v2742 = vmul.u32 %v2738, %v2740
        %v2743 = vmul.u32 %v2738, %v2741
        %v2744 = vmul.u32 %v2739, %v2740
        %v2745 = vmul.u32 %v2739, %v2741
        %v2746 = vshll.u32 %v2743, 16
        %v2747 = vshrl.u32 %v2743, 16
        %v2748 = vshll.u32 %v2744, 16
        %v2749 = vshrl.u32 %v2744, 16
        %vm2750 = vc.u32 %v2742, %v2746
        %v2751 = vsel %vm2750, 1, 0
        %v2752 = vadd.s32 %v2742, %v2746
        %v2753 = vadd.s32 %v2745, %v2751
        %vm2754 = vc.u32 %v2752, %v2748
        %v2755 = vsel %vm2754, 1, 0
        %v2756 = vadd.s32 %v2752, %v2748
        %v2757 = vadd.s32 %v2753, %v2755
        %v2758 = vadd.s32 %v2757, %v2747
        %v2759 = vadd.s32 %v2758, %v2749
        %v2760 = vmul.u32 %v2715, %v2706
        %v2761 = vadd.s32 %v2737, %v2756
        %vm2762 = vc.u32 %v2737, %v2756
        %v2763 = vadd.s32 %v2759, 1
        %v2764 = vsel %vm2762, %v2763, %v2759
        %v2765 = vadd.s32 %v2760, %v2764
        %v2766 = vadd.s32 %v2765, 536870912
        %v2767 = vshrl.u32 %v2766, 30
        %v2768 = vshll.u32 %v2767, 30
        %v2769 = vsub.s32 %v2765, %v2768
        %vm2770 = vcmp.lt.s32.totalorder %v2769, 0
        %v2771 = vsub.s32 0, %v2769
        %v2772 = vsel %vm2770, %v2771, %v2769
        %v2773 = vclz %v2772
        %v2774 = vsub.s32 %v2773, 2
        %vm2775 = vcmp.gt.s32.totalorder 0, %v2774
        %v2776 = vsel %vm2775, 0, %v2774
        %v2777 = vsub.s32 32, %v2776
        %v2778 = vshll.u32 %v2769, %v2776
        %v2779 = vshrl.u32 %v2761, %v2777
        %v2780 = vor.u32 %v2778, %v2779
        %v2781 = vsub.s32 4294967266, %v2776
        %v2782 = vadd.s32 %v2781, 127
        %v2783 = vshll.u32 %v2782, 23
        %v2784 = vor.u32 4788187, %v2783
        %v2785 = vand.u32 2147483647, %v2784
        %v2787 = vcvt.s32.f32 %v2780
        %v2788 = vmul.f32 %v2787, %v2785
        %v2789 = vxor.u32 %v2788, 2147483648
        %v2790 = vsel %vm2669, %v2789, %v2788
        %v2791 = vsub.s32 4, %v2767
        %v2792 = vsel %vm2669, %v2791, %v2767
        %v2793 = vsel %vm2668, %v495, %v2790
        %v2794 = vsel %vm2668, 0, %v2792
        %v2795 = vmul.f32 %v2793, %v2793
        %v2796 = vmul.f32 %v2795, -0.001358992
        %v2797 = vadd.f32 %v2796, 0.041655596
        %v2798 = vmul.f32 %v2795, %v2797
        %v2799 = vadd.f32 %v2798, -0.4999988
        %v2800 = vmul.f32 %v2795, %v2799
        %v2801 = vadd.f32 1.0, %v2800
        %v2802 = vmul.f32 %v2793, %v2793
        %v2803 = vmul.f32 %v2802, -0.00019511016
        %v2804 = vadd.f32 %v2803, 0.008332121
        %v2805 = vmul.f32 %v2802, %v2804
        %v2806 = vadd.f32 %v2805, -0.16666654
        %v2807 = vmul.f32 %v2802, %v2806
        %v2808 = vadd.f32 %v2807, 1.0
        %v2809 = vmul.f32 %v2808, %v2793
        %vm2810 = vweird.f32 %v495
        %v2811 = vadd.s32 %v2794, 3
        %v2812 = vand.u32 %v2811, 3
        %vm2813 = vcmp.lt.s32.totalorder %v2812, 2
        %vm2814 = vcmp.eq.s32.totalorder %v2812, 0
        %v2815 = vxor.u32 %v2809, 2147483648
        %v2816 = vsel %vm2814, %v2801, %v2815
        %vm2817 = vcmp.eq.s32.totalorder %v2812, 2
        %v2818 = vxor.u32 %v2801, 2147483648
        %v2819 = vsel %vm2817, %v2818, %v2809
        %v2820 = vsel %vm2813, %v2816, %v2819
        %v2821 = vsel %vm2810, nan, %v2820
        %v2822 = vand.u32 2147483647, %v496
        %vm2823 = vcmp.le.f32.partialorder %v2822, 0.7853982
        %vm2824 = vcmp.lt.s32.totalorder %v496, 0
        %v2825 = vand.u32 %v496, 2139095040
        %v2826 = vshrl.u32 %v2825, 23
        %v2827 = vsub.s32 %v2826, 127
        %v2828 = vand.u32 2147483647, %v496
        %v2829 = vand.u32 %v2828, 8388607
        %v2830 = vor.u32 %v2829, 8388608
        %v2831 = vsub.s32 0, %v2830
        %v2832 = vadd.s32 %v2827, 1
        %vm2833 = vcmp.gt.s32.totalorder %v2832, 0
        %v2834 = vsel %vm2833, %v2832, 0
        %v2835 = vshrl.u32 %v2834, 5
        %v2836 = vand.u32 %v2834, 31
        %v2837 = vsub.s32 32, %v2836
        %v2838 = vshrl.u32 683565275, %v2837
        %v2839 = vshll.u32 683565275, %v2836
        %v2840 = vshrl.u32 2475754826, %v2837
        %v2841 = vor.u32 %v2839, %v2840
        %v2842 = vshll.u32 2475754826, %v2836
        %v2843 = vshrl.u32 2131351028, %v2837
        %v2844 = vor.u32 %v2842, %v2843
        %v2845 = vshll.u32 2131351028, %v2836
        %v2846 = vshrl.u32 2102212464, %v2837
        %v2847 = vor.u32 %v2845, %v2846
        %v2848 = vshll.u32 2102212464, %v2836
        %v2849 = vshrl.u32 920167782, %v2837
        %v2850 = vor.u32 %v2848, %v2849
        %v2851 = vshll.u32 920167782, %v2836
        %v2852 = vshrl.u32 1326507024, %v2837
        %v2853 = vor.u32 %v2851, %v2852
        %vm2854 = vcmp.lt.s32.totalorder %v2835, 1
        %vm2855 = vcmp.lt.s32.totalorder %v2835, 2
        %vm2856 = vcmp.lt.s32.totalorder %v2835, 3
        %vm2857 = vcmp.lt.s32.totalorder %v2835, 4
        %v2858 = vsel %vm2854, %v2838, %v2841
        %v2859 = vsel %vm2857, %v2847, 2102212464
        %v2860 = vsel %vm2856, %v2844, %v2859
        %v2861 = vsel %vm2855, %v2858, %v2860
        %v2862 = vsel %vm2854, %v2841, %v2844
        %v2863 = vsel %vm2857, %v2850, 920167782
        %v2864 = vsel %vm2856, %v2847, %v2863
        %v2865 = vsel %vm2855, %v2862, %v2864
        %v2866 = vsel %vm2854, %v2844, %v2847
        %v2867 = vsel %vm2857, %v2853, 1326507024
        %v2868 = vsel %vm2856, %v2850, %v2867
        %v2869 = vsel %vm2855, %v2866, %v2868
        %v2870 = vshll.u32 %v2830, 8
        %v2871 = vand.u32 %v2870, 65535
        %v2872 = vshrl.u32 %v2870, 16
        %v2873 = vand.u32 %v2869, 65535
        %v2874 = vshrl.u32 %v2869, 16
        %v2875 = vmul.u32 %v2871, %v2873
        %v2876 = vmul.u32 %v2871, %v2874
        %v2877 = vmul.u32 %v2872, %v2873
        %v2878 = vmul.u32 %v2872, %v2874
        %v2879 = vshll.u32 %v2876, 16
        %v2880 = vshrl.u32 %v2876, 16
        %v2881 = vshll.u32 %v2877, 16
        %v2882 = vshrl.u32 %v2877, 16
        %vm2883 = vc.u32 %v2875, %v2879
        %v2884 = vsel %vm2883, 1, 0
        %v2885 = vadd.s32 %v2875, %v2879
        %v2886 = vadd.s32 %v2878, %v2884
        %vm2887 = vc.u32 %v2885, %v2881
        %v2888 = vsel %vm2887, 1, 0
        %v2889 = vadd.s32 %v2885, %v2881
        %v2890 = vadd.s32 %v2886, %v2888
        %v2891 = vadd.s32 %v2890, %v2880
        %v2892 = vadd.s32 %v2891, %v2882
        %v2893 = vand.u32 %v2870, 65535
        %v2894 = vshrl.u32 %v2870, 16
        %v2895 = vand.u32 %v2865, 65535
        %v2896 = vshrl.u32 %v2865, 16
        %v2897 = vmul.u32 %v2893, %v2895
        %v2898 = vmul.u32 %v2893, %v2896
        %v2899 = vmul.u32 %v2894, %v2895
        %v2900 = vmul.u32 %v2894, %v2896
        %v2901 = vshll.u32 %v2898, 16
        %v2902 = vshrl.u32 %v2898, 16
        %v2903 = vshll.u32 %v2899, 16
        %v2904 = vshrl.u32 %v2899, 16
        %vm2905 = vc.u32 %v2897, %v2901
        %v2906 = vsel %vm2905, 1, 0
        %v2907 = vadd.s32 %v2897, %v2901
        %v2908 = vadd.s32 %v2900, %v2906
        %vm2909 = vc.u32 %v2907, %v2903
        %v2910 = vsel %vm2909, 1, 0
        %v2911 = vadd.s32 %v2907, %v2903
        %v2912 = vadd.s32 %v2908, %v2910
        %v2913 = vadd.s32 %v2912, %v2902
        %v2914 = vadd.s32 %v2913, %v2904
        %v2915 = vmul.u32 %v2870, %v2861
        %v2916 = vadd.s32 %v2892, %v2911
        %vm2917 = vc.u32 %v2892, %v2911
        %v2918 = vadd.s32 %v2914, 1
        %v2919 = vsel %vm2917, %v2918, %v2914
        %v2920 = vadd.s32 %v2915, %v2919
        %v2921 = vadd.s32 %v2920, 536870912
        %v2922 = vshrl.u32 %v2921, 30
        %v2923 = vshll.u32 %v2922, 30
        %v2924 = vsub.s32 %v2920, %v2923
        %vm2925 = vcmp.lt.s32.totalorder %v2924, 0
        %v2926 = vsub.s32 0, %v2924
        %v2927 = vsel %vm2925, %v2926, %v2924
        %v2928 = vclz %v2927
        %v2929 = vsub.s32 %v2928, 2
        %vm2930 = vcmp.gt.s32.totalorder 0, %v2929
        %v2931 = vsel %vm2930, 0, %v2929
        %v2932 = vsub.s32 32, %v2931
        %v2933 = vshll.u32 %v2924, %v2931
        %v2934 = vshrl.u32 %v2916, %v2932
        %v2935 = vor.u32 %v2933, %v2934
        %v2936 = vsub.s32 4294967266, %v2931
        %v2937 = vadd.s32 %v2936, 127
        %v2938 = vshll.u32 %v2937, 23
        %v2939 = vor.u32 4788187, %v2938
        %v2940 = vand.u32 2147483647, %v2939
        %v2942 = vcvt.s32.f32 %v2935
        %v2943 = vmul.f32 %v2942, %v2940
        %v2944 = vxor.u32 %v2943, 2147483648
        %v2945 = vsel %vm2824, %v2944, %v2943
        %v2946 = vsub.s32 4, %v2922
        %v2947 = vsel %vm2824, %v2946, %v2922
        %v2948 = vsel %vm2823, %v496, %v2945
        %v2949 = vsel %vm2823, 0, %v2947
        %v2950 = vmul.f32 %v2948, %v2948
        %v2951 = vmul.f32 %v2950, -0.001358992
        %v2952 = vadd.f32 %v2951, 0.041655596
        %v2953 = vmul.f32 %v2950, %v2952
        %v2954 = vadd.f32 %v2953, -0.4999988
        %v2955 = vmul.f32 %v2950, %v2954
        %v2956 = vadd.f32 1.0, %v2955
        %v2957 = vmul.f32 %v2948, %v2948
        %v2958 = vmul.f32 %v2957, -0.00019511016
        %v2959 = vadd.f32 %v2958, 0.008332121
        %v2960 = vmul.f32 %v2957, %v2959
        %v2961 = vadd.f32 %v2960, -0.16666654
        %v2962 = vmul.f32 %v2957, %v2961
        %v2963 = vadd.f32 %v2962, 1.0
        %v2964 = vmul.f32 %v2963, %v2948
        %vm2965 = vweird.f32 %v496
        %v2966 = vadd.s32 %v2949, 3
        %v2967 = vand.u32 %v2966, 3
        %vm2968 = vcmp.lt.s32.totalorder %v2967, 2
        %vm2969 = vcmp.eq.s32.totalorder %v2967, 0
        %v2970 = vxor.u32 %v2964, 2147483648
        %v2971 = vsel %vm2969, %v2956, %v2970
        %vm2972 = vcmp.eq.s32.totalorder %v2967, 2
        %v2973 = vxor.u32 %v2956, 2147483648
        %v2974 = vsel %vm2972, %v2973, %v2964
        %v2975 = vsel %vm2968, %v2971, %v2974
        %v2976 = vsel %vm2965, nan, %v2975
        %2977 = vst [vmem:[%s276 + $0x100] sm:$0xff] %v651
        %2978 = vst [vmem:[%s276 + $0x108] sm:$0xff] %v806
        %2979 = vst [vmem:[%s276 + $0x110] sm:$0xff] %v961
        %2980 = vst [vmem:[%s276 + $0x118] sm:$0xff] %v1116
        %2981 = vst [vmem:[%s276 + $0x120] sm:$0xff] %v1271
        %2982 = vst [vmem:[%s276 + $0x128] sm:$0xff] %v1426
        %2983 = vst [vmem:[%s276 + $0x130] sm:$0xff] %v1581
        %2984 = vst [vmem:[%s276 + $0x138] sm:$0xff] %v1736
        %2985 = vst [vmem:[%s276 + $0x140] sm:$0xff] %v1891
        %2986 = vst [vmem:[%s276 + $0x148] sm:$0xff] %v2046
        %2987 = vst [vmem:[%s276 + $0x150] sm:$0xff] %v2201
        %2988 = vst [vmem:[%s276 + $0x158] sm:$0xff] %v2356
        %2989 = vst [vmem:[%s276 + $0x160] sm:$0xff] %v2511
        %2990 = vst [vmem:[%s276 + $0x168] sm:$0xff] %v2666
        %2991 = vst [vmem:[%s276 + $0x170] sm:$0xff] %v2821
        %2992 = vst [vmem:[%s276 + $0x178] sm:$0xff] %v2976
        %s2993 = sand.u32 %s164, 1
        %s2994 = scalar_lea.sflag [#allocation4], %s2993
        %s2995 = sand.u32 %s164, 1
        %s2996 = smul.addr %s2995, 384
        %s2997 = scalar_lea.vmem [#allocation5], %s2996
        // Predicated region
        $region45: #{tpu_custom_call.1} parent=39 // pred_check
          %p2998 = pneg %p174
        $region46: #{tpu_custom_call.1} parent=39 // pred_check_branch
          %3000 = sbr.rel (%p2998) target = $region48
        $region47: #{tpu_custom_call.1} parent=39 // pred_region
          %s3001 = smul.u32 2, %s24
          %3003 = vsyncadd %s2994, 0
          %s3004 = smul.addr %s25, 48
          %s3005 = sadd.s32 %s3001, %s3004
          %s3006 = smul.addr %s3005, 8
          %s3007 = scalar_lea.hbm %s5, %s3006
          %s3008 = sshll.u32 %s2997, 4
          %s3009 = int_to_ptr.vmem [resolvable:$true] %s3008
          %s3010 = sshll.u32 %s3007, 4
          %s3011 = int_to_ptr.hbm [resolvable:$true] %s3010
          %3016 = dma.vmem_to_hbm [thread:$0]  %s3009, 6144, %s3011, %s2994, 256, 256, 16
        $region48: #{tpu_custom_call.1} parent=39 // pred_fallthru
          _
      $region40: #{tpu_custom_call.1} parent=5 // pred_fallthru
        _
      %p3017 = scmp.le.s32.totalorder 2, %s15
      // Predicated region
      $region49: #{tpu_custom_call.1} parent=5 // pred_check
        %p3018 = pneg %p3017
      $region50: #{tpu_custom_call.1} parent=5 // pred_check_branch
        %3020 = sbr.rel (%p3018) target = $region52
      $region51: #{tpu_custom_call.1} parent=5 // pred_region
        %s3021 = ssub.s32 %s15, 2
        // Predicated region
        $region53: #{tpu_custom_call.1} parent=51 // pred_check
          %p3022 = pneg %p180
        $region54: #{tpu_custom_call.1} parent=51 // pred_check_branch
          %3024 = sbr.rel (%p3022) target = $region56
        $region55: #{tpu_custom_call.1} parent=51 // pred_region
          %s3025 = sand.u32 %s165, 1
          %s3026 = scalar_lea.sflag [#allocation4], %s3025
          %s3027 = sand.u32 %s165, 1
          %s3028 = smul.addr %s3027, 384
          %s3029 = scalar_lea.vmem [#allocation5], %s3028
          %3031 = dma.done %s3026, 6144
        $region56: #{tpu_custom_call.1} parent=51 // pred_fallthru
          _
      $region52: #{tpu_custom_call.1} parent=5 // pred_fallthru
        _
    $region6: #{tpu_custom_call.1} parent=1 // loop_footer
      %s19 = sadd.s32 1, %s15
    $region7: #{tpu_custom_call.1} parent=1 // loop_footer_branch
      %14 = sbr.rel target = $region3
    $region8: #{tpu_custom_call.1} parent=1 // loop_exit
      _
    %3032 = vsyncpa [#allocation3], 1
    %s3033 = scalar_lea.sflag [#allocation3], 1
    %3034 = vsyncpa %s3033, 1
    %3035 = vsyncpa [#allocation4], 1
    %s3036 = scalar_lea.sflag [#allocation4], 1
    %3037 = vsyncpa %s3036, 1

</llo_original>
